<compile_context>
chip_gen: v7x
topology: tpu7x:2x2x1
jax: 0.10.0
libtpu: 0.0.40
codegen_flags: <defaults>
</compile_context>

<pallas_src>
import jax
import jax.numpy as jnp
from jax.experimental import pallas as pl
from jax.experimental.pallas import tpu as pltpu


def _round_up(x, m):
    return ((x + m - 1) // m) * m


def _question_attention_kernel(q_ref, t_ref, w_ref, b_ref, o_ref, att_scratch):
    # q_ref: (Bt, 1, D)   t_ref: (Bt, L, D)   w_ref: (D, d_out)   b_ref: (1, d_out)
    # o_ref: (Bt, d_out)  att_scratch: (Bt, 1, D) f32 VMEM
    q = q_ref[...]            # native dtype, feeds MXU directly
    t = t_ref[...]            # native dtype, feeds MXU directly

    # scores[b, 0, l] = sum_d q[b, 0, d] * t[b, l, d]   == bmm(q, text^T), MXU w/ f32 acc
    scores = jnp.einsum('bqd,bkd->bqk', q, t,
                        preferred_element_type=jnp.float32)          # (Bt, 1, L) f32

    # softmax over the key axis (matches Softmax(dim=1) on the (B*1, L) view)
    m = jnp.max(scores, axis=-1, keepdims=True)
    e = jnp.exp(scores - m)
    p = e * pl.reciprocal(jnp.sum(e, axis=-1, keepdims=True), approx=True)

    # attVector = bmm(p, text)  -- batched MXU matmul with f32 accumulation
    att_scratch[...] = jnp.einsum('bqk,bkd->bqd', p.astype(t.dtype), t,
                                  preferred_element_type=jnp.float32)  # (Bt, 1, D) f32
    # weightedSum = sum over output_len (== 1): contiguous squeezed read from VMEM
    att = att_scratch[:, 0, :]                                         # (Bt, D) f32

    # relu(q_linear(weightedSum)) -- plain 2-D MXU matmul, f32 accumulation
    out = jnp.dot(att.astype(w_ref.dtype), w_ref[...],
                  preferred_element_type=jnp.float32)
    out = out + b_ref[...].astype(jnp.float32)
    o_ref[...] = jnp.maximum(out, 0.0).astype(o_ref.dtype)


def question_attention(question, text, w_q, b_q, *, block_b=None):
    """question: (B, d_model), text: (B, L, d_model),
    w_q: (d_model, d_out) (PyTorch weight stored transposed), b_q: (d_out,)."""
    B, D = question.shape
    Bq, L, D2 = text.shape
    assert Bq == B and D2 == D
    d_out = w_q.shape[1]

    # --- choose the batch tile -------------------------------------------------
    itemsize = jnp.dtype(text.dtype).itemsize
    # keep one text block under ~12 MiB so the double-buffered pair (+ weight,
    # question, output, scratch) stays well inside v7x's 64 MiB VMEM.
    text_block_budget = 12 * 1024 * 1024
    max_bt = max(8, (text_block_budget // max(1, L * D * itemsize)) // 8 * 8)
    if block_b is None:
        block_b = 128                      # MXU-friendly M for the q_linear matmul
    Bt = min(_round_up(B, 8), _round_up(block_b, 8), max_bt)
    B_pad = _round_up(B, Bt)

    if B_pad != B:                         # pad batch; padded rows are sliced off below
        question = jnp.pad(question, ((0, B_pad - B), (0, 0)))
        text = jnp.pad(text, ((0, B_pad - B), (0, 0), (0, 0)))

    q3 = question.reshape(B_pad, 1, D)     # the unsqueeze(1), done on the host side
    b2 = b_q.reshape(1, d_out)
    grid = (B_pad // Bt,)

    out = pl.pallas_call(
        _question_attention_kernel,
        out_shape=jax.ShapeDtypeStruct((B_pad, d_out), question.dtype),
        grid_spec=pltpu.PrefetchScalarGridSpec(
            num_scalar_prefetch=0,
            grid=grid,
            in_specs=[
                pl.BlockSpec((Bt, 1, D), lambda i: (i, 0, 0)),   # question tile
                pl.BlockSpec((Bt, L, D), lambda i: (i, 0, 0)),   # text tile (streamed)
                pl.BlockSpec((D, d_out), lambda i: (0, 0)),      # weight: resident
                pl.BlockSpec((1, d_out), lambda i: (0, 0)),      # bias:   resident
            ],
            out_specs=pl.BlockSpec((Bt, d_out), lambda i: (i, 0)),
            scratch_shapes=[pltpu.VMEM((Bt, 1, D), jnp.float32)],
        ),
        compiler_params=pltpu.CompilerParams(
            dimension_semantics=("parallel",),          # batch steps split across TCs
            vmem_limit_bytes=48 * 1024 * 1024,
        ),
    )(q3, text, w_q, b2)

    return out[:B]


if __name__ == "__main__":
    key = jax.random.PRNGKey(0)
    # small, lane-dense shapes; block_b=16 exercises a multi-step grid (grid=(2,))
    B, L, d_model, d_output = 32, 8, 128, 128
    k1, k2, k3, k4 = jax.random.split(key, 4)

    question = jax.random.normal(k1, (B, d_model), dtype=jnp.float32)
    text = jax.random.normal(k2, (B, L, d_model), dtype=jnp.float32)

    # q_linear params, PyTorch-style uniform(-1/sqrt(fan_in), 1/sqrt(fan_in));
    # weight stored transposed as (d_model, d_output) so x @ W == x @ weight.T
    bound = 1.0 / (d_model ** 0.5)
    w_q = jax.random.uniform(k3, (d_model, d_output), minval=-bound, maxval=bound,
                             dtype=jnp.float32)
    b_q = jax.random.uniform(k4, (d_output,), minval=-bound, maxval=bound,
                             dtype=jnp.float32)

    out = question_attention(question, text, w_q, b_q, block_b=16)
    out = jax.block_until_ready(out)

    # plain-JAX reference
    scores_ref = jnp.einsum('bd,bld->bl', question, text)
    p_ref = jax.nn.softmax(scores_ref, axis=-1)
    att_ref = jnp.einsum('bl,bld->bd', p_ref, text)
    ref = jnp.maximum(att_ref @ w_q + b_q, 0.0)

    assert out.shape == (B, d_output)
    assert jnp.allclose(out, ref, atol=1e-2, rtol=1e-2), "kernel output mismatch vs reference"

    print("KERNEL_OK")
</pallas_src>

<mosaic_0001>
module attributes {stable_mosaic.version = 11 : i64} {
  func.func @_question_attention_kernel(%arg0: i32, %arg1: memref<16x1x128xf32, #tpu.memory_space<vmem>>, %arg2: memref<16x8x128xf32, #tpu.memory_space<vmem>>, %arg3: memref<128x128xf32, #tpu.memory_space<vmem>>, %arg4: memref<1x128xf32, #tpu.memory_space<vmem>>, %arg5: memref<16x128xf32, #tpu.memory_space<vmem>>, %arg6: memref<16x1x128xf32, #tpu.memory_space<vmem>>) attributes {dimension_semantics = [#tpu.dimension_semantics<parallel>], iteration_bounds = array<i64: 2>, scalar_prefetch = 0 : i64, scratch_operands = 1 : i64, tpu.core_type = #tpu.core_type<tc>, window_params = [{transform_indices = @transform_0, window_bounds = array<i64: 16, 1, 128>}, {transform_indices = @transform_1, window_bounds = array<i64: 16, 8, 128>}, {pipeline_mode = #tpu.pipeline_mode<synchronous>, transform_indices = @transform_2, window_bounds = array<i64: 128, 128>}, {pipeline_mode = #tpu.pipeline_mode<synchronous>, transform_indices = @transform_3, window_bounds = array<i64: 1, 128>}, {transform_indices = @transform_4, window_bounds = array<i64: 16, 128>}]} {
    %c0 = arith.constant 0 : index
    %c0_0 = arith.constant 0 : index
    %c0_1 = arith.constant 0 : index
    %0 = vector.load %arg1[%c0, %c0_0, %c0_1] : memref<16x1x128xf32, #tpu.memory_space<vmem>>, vector<16x1x128xf32>
    %c0_2 = arith.constant 0 : index
    %c0_3 = arith.constant 0 : index
    %c0_4 = arith.constant 0 : index
    %1 = vector.load %arg2[%c0_2, %c0_3, %c0_4] : memref<16x8x128xf32, #tpu.memory_space<vmem>>, vector<16x8x128xf32>
    "tpu.trace_start"() <{level = 10 : i32, message = "bqd,bkd->bqk"}> : () -> ()
    %cst = arith.constant dense<0.000000e+00> : vector<16x1x8xf32>
    %2 = tpu.matmul %0, %1, %cst {dimension_numbers = #tpu.dot_dimension_numbers<[2], [2], [1], [1], [0, 0, 0, 1, 1, 1], [0], [0]>} : vector<16x1x128xf32>, vector<16x8x128xf32>, vector<16x1x8xf32> -> vector<16x1x8xf32>
    "tpu.trace_stop"() : () -> ()
    %cst_5 = arith.constant dense<0xFF800000> : vector<16x1xf32>
    %3 = vector.multi_reduction <maximumf>, %2, %cst_5 [2] : vector<16x1x8xf32> to vector<16x1xf32>
    %4 = vector.shape_cast %3 : vector<16x1xf32> to vector<16x1x1xf32>
    %5 = vector.broadcast %4 : vector<16x1x1xf32> to vector<16x1x8xf32>
    %6 = arith.subf %2, %5 : vector<16x1x8xf32>
    %7 = math.exp %6 : vector<16x1x8xf32>
    %cst_6 = arith.constant dense<0.000000e+00> : vector<16x1xf32>
    %8 = vector.multi_reduction <add>, %7, %cst_6 [2] : vector<16x1x8xf32> to vector<16x1xf32>
    %9 = vector.shape_cast %8 : vector<16x1xf32> to vector<16x1x1xf32>
    %10 = tpu.reciprocal %9 {approx = true} : vector<16x1x1xf32> -> vector<16x1x1xf32>
    %11 = vector.broadcast %10 : vector<16x1x1xf32> to vector<16x1x8xf32>
    %12 = arith.mulf %7, %11 : vector<16x1x8xf32>
    "tpu.trace_start"() <{level = 10 : i32, message = "bqk,bkd->bqd"}> : () -> ()
    %cst_7 = arith.constant dense<0.000000e+00> : vector<16x1x128xf32>
    %13 = tpu.matmul %12, %1, %cst_7 {dimension_numbers = #tpu.dot_dimension_numbers<[2], [1], [1], [2], [0, 0, 0, 1, 1, 2], [0], [0]>} : vector<16x1x8xf32>, vector<16x8x128xf32>, vector<16x1x128xf32> -> vector<16x1x128xf32>
    "tpu.trace_stop"() : () -> ()
    %c0_8 = arith.constant 0 : index
    %c0_9 = arith.constant 0 : index
    %c0_10 = arith.constant 0 : index
    %14 = vector.load %arg6[%c0_8, %c0_9, %c0_10] : memref<16x1x128xf32, #tpu.memory_space<vmem>>, vector<16x1x128xf32>
    tpu.vector_store %arg6[%c0_8, %c0_9, %c0_10], %13 {strides = array<i32>} : memref<16x1x128xf32, #tpu.memory_space<vmem>>, vector<16x1x128xf32>,
    %c0_11 = arith.constant 0 : index
    %c0_12 = arith.constant 0 : index
    %c0_13 = arith.constant 0 : index
    %15 = vector.load %arg6[%c0_11, %c0_12, %c0_13] : memref<16x1x128xf32, #tpu.memory_space<vmem>>, vector<16x1x128xf32>
    %16 = vector.shape_cast %15 : vector<16x1x128xf32> to vector<16x128xf32>
    %c0_14 = arith.constant 0 : index
    %c0_15 = arith.constant 0 : index
    %17 = vector.load %arg3[%c0_14, %c0_15] : memref<128x128xf32, #tpu.memory_space<vmem>>, vector<128x128xf32>
    %cst_16 = arith.constant dense<0.000000e+00> : vector<16x128xf32>
    %18 = tpu.matmul %16, %17, %cst_16 {dimension_numbers = #tpu.dot_dimension_numbers<[1], [0], [0], [1], [0, 0, 1, 1], [], []>} : vector<16x128xf32>, vector<128x128xf32>, vector<16x128xf32> -> vector<16x128xf32>
    %c0_17 = arith.constant 0 : index
    %c0_18 = arith.constant 0 : index
    %19 = vector.load %arg4[%c0_17, %c0_18] : memref<1x128xf32, #tpu.memory_space<vmem>>, vector<1x128xf32>
    %20 = vector.broadcast %19 : vector<1x128xf32> to vector<16x128xf32>
    %21 = arith.addf %18, %20 : vector<16x128xf32>
    %cst_19 = arith.constant 0.000000e+00 : f32
    %22 = vector.broadcast %cst_19 : f32 to vector<16x128xf32>
    %23 = arith.maximumf %21, %22 : vector<16x128xf32>
    %c0_20 = arith.constant 0 : index
    %c0_21 = arith.constant 0 : index
    %24 = vector.load %arg5[%c0_20, %c0_21] : memref<16x128xf32, #tpu.memory_space<vmem>>, vector<16x128xf32>
    tpu.vector_store %arg5[%c0_20, %c0_21], %23 {strides = array<i32>} : memref<16x128xf32, #tpu.memory_space<vmem>>, vector<16x128xf32>,
    return
  }
  func.func @transform_0(%arg0: i32) -> (i32, i32, i32) {
    %c0_i32 = arith.constant 0 : i32
    %c0_i32_0 = arith.constant 0 : i32
    %c0_i32_1 = arith.constant 0 : i32
    return %arg0, %c0_i32, %c0_i32_0 : i32, i32, i32
  }
  func.func @transform_1(%arg0: i32) -> (i32, i32, i32) {
    %c0_i32 = arith.constant 0 : i32
    %c0_i32_0 = arith.constant 0 : i32
    %c0_i32_1 = arith.constant 0 : i32
    return %arg0, %c0_i32, %c0_i32_0 : i32, i32, i32
  }
  func.func @transform_2(%arg0: i32) -> (i32, i32) {
    %c0_i32 = arith.constant 0 : i32
    %c0_i32_0 = arith.constant 0 : i32
    %c0_i32_1 = arith.constant 0 : i32
    return %c0_i32, %c0_i32_0 : i32, i32
  }
  func.func @transform_3(%arg0: i32) -> (i32, i32) {
    %c0_i32 = arith.constant 0 : i32
    %c0_i32_0 = arith.constant 0 : i32
    %c0_i32_1 = arith.constant 0 : i32
    return %c0_i32, %c0_i32_0 : i32, i32
  }
  func.func @transform_4(%arg0: i32) -> (i32, i32) {
    %c0_i32 = arith.constant 0 : i32
    %c0_i32_0 = arith.constant 0 : i32
    return %arg0, %c0_i32 : i32, i32
  }
}

</mosaic_0001>

<llo_original>
// kernel: tpu_custom_call.1
$region0: #{tpu_custom_call.1}
  #allocation0 [shape = 'u32[]', space=smem, size = 0x4, offset = 0x4, fixed_abs, tag = 'smem constant byte address 0x4 - core index']
  #allocation1 [shape = 'u32[144,128]{1,0:T(1,128)}', space=vmem, size = 0x12000, scoped, tag = 'internal scratch']
  #allocation2 [shape = 'f32[16,1,128]{2,1,0:T(1,128)}', space=vmem, size = 0x2000, scoped, tag = 'scratch operand']
  %s0 = inlined_call_operand.hbm [shape: f32[32,1,128], index: 0, kind: input, shape index: {}]
  %s1 = inlined_call_operand.hbm [shape: f32[32,8,128], index: 1, kind: input, shape index: {}]
  %s2 = inlined_call_operand.hbm [shape: f32[128,128], index: 2, kind: input, shape index: {}]
  %s3 = inlined_call_operand.vmem [shape: f32[1,128], index: 3, kind: input, shape index: {}]
  %s4 = inlined_call_operand.hbm [shape: f32[32,128], index: 4, kind: output, shape index: {}]
  %s5 = sld [smem:[#allocation0]]
  $region61: #{tpu_custom_call.1} parent=0
    _
  %s7 = ssub.s32 1, %s5
  %s8 = scalar_select 0, %s7, %s5
  $region1: #{tpu_custom_call.1} parent=0
    #allocation3 [shape = 'u8[16384]{0}', space=vmem, size = 0x4000, scoped, tag = 'input window, operand 0']
    #allocation4 [shape = 's32[2]{0}', space=sflag, size = 0x8, scoped, tag = 'scoped memory for tpu_custom_call.1']
    #allocation5 [shape = 's32[2]{0}', space=sflag, size = 0x8, scoped, tag = 'scoped memory for tpu_custom_call.1']
    #allocation6 [shape = 'u8[131072]{0}', space=vmem, size = 0x20000, scoped, tag = 'input window, operand 1']
    #allocation7 [shape = 's32[2]{0}', space=sflag, size = 0x8, scoped, tag = 'scoped memory for tpu_custom_call.1']
    #allocation8 [shape = 'u8[65536]{0}', space=vmem, size = 0x10000, scoped, tag = 'input window, operand 2, single buffered']
    #allocation9 [shape = 'u8[16384]{0}', space=vmem, size = 0x4000, scoped, tag = 'output window, operand 0']
    %9 = vsyncpa [#allocation4], 0
    %s10 = scalar_lea.sflag [#allocation4], 1
    %11 = vsyncpa %s10, 0
    %12 = vsyncpa [#allocation7], 0
    %s13 = scalar_lea.sflag [#allocation7], 1
    %14 = vsyncpa %s13, 0
    %15 = vsyncpa [#allocation5], 0
    %s16 = scalar_lea.sflag [#allocation5], 1
    %17 = vsyncpa %s16, 0
    loop: start=0, step=1, limit=4
    $region2: #{tpu_custom_call.1} parent=1 // loop_pre_header
      _
    $region3: #{tpu_custom_call.1} parent=1 // loop_header
      %s19 = sphi 0, %s23
      %p20 = scmp.ge.s32.totalorder %s19, 4
      %s29 = sphi 0, %s31
      %s32 = sphi 0, %s29
      %s33 = sphi 0, %s32
      %s49 = sphi 0, %s33
      %s55 = sphi 0, %s57
      %s58 = sphi 0, %s55
      %s59 = sphi 0, %s58
      %s75 = sphi 0, %s59
      %s79 = sphi 0, %s79
      %s81 = sphi 0, %s79
      %s82 = sphi 0, %s81
      %s96 = sphi 0, %s82
      %s100 = sphi 0, %s100
      %s102 = sphi 0, %s100
      %s103 = sphi 0, %s102
      %s117 = sphi 0, %s103
      %s123 = sphi 0, %s125
      %s126 = sphi 0, %s123
      %s127 = sphi 0, %s126
      %s143 = sphi 0, %s127
    $region4: #{tpu_custom_call.1} parent=1 // loop_header_branch
      %22 = sbr.rel (%p20) target = $region8
    $region5: #{tpu_custom_call.1} parent=1 // loop_body
      %s24 = ssub.s32 %s19, 1
      %s25 = ssub.s32 %s19, 2
      %s26 = sadd.s32 %s19, 1
      %s27 = ssub.s32 %s19, %s26
      %p28 = scmp.eq.s32.totalorder %s27, 0
      %s30 = sadd.s32 %s29, 1
      %s31 = scalar_select %p28, %s29, %s30
      %p34 = pneg %p28
      %p35 = scmp.eq.s32.totalorder %s19, 1
      %p36 = por %p34, %p35
      %p37 = scmp.ne.s32.totalorder %s29, %s32
      %p38 = scmp.eq.s32.totalorder %s19, 0
      %p39 = por %p37, %p38
      %p40 = scmp.ne.s32.totalorder %s29, %s32
      %p41 = scmp.eq.s32.totalorder %s24, 1
      %p42 = por %p40, %p41
      %p43 = scmp.ne.s32.totalorder %s32, %s33
      %p44 = scmp.eq.s32.totalorder %s24, 0
      %p45 = por %p43, %p44
      %p46 = scmp.ne.s32.totalorder %s32, %s33
      %p47 = scmp.eq.s32.totalorder %s25, 1
      %p48 = por %p46, %p47
      %p50 = scmp.ne.s32.totalorder %s33, %s49
      %p51 = scmp.eq.s32.totalorder %s25, 0
      %p52 = por %p50, %p51
      %s53 = ssub.s32 %s19, %s26
      %p54 = scmp.eq.s32.totalorder %s53, 0
      %s56 = sadd.s32 %s55, 1
      %s57 = scalar_select %p54, %s55, %s56
      %p60 = pneg %p54
      %p61 = scmp.eq.s32.totalorder %s19, 1
      %p62 = por %p60, %p61
      %p63 = scmp.ne.s32.totalorder %s55, %s58
      %p64 = scmp.eq.s32.totalorder %s19, 0
      %p65 = por %p63, %p64
      %p66 = scmp.ne.s32.totalorder %s55, %s58
      %p67 = scmp.eq.s32.totalorder %s24, 1
      %p68 = por %p66, %p67
      %p69 = scmp.ne.s32.totalorder %s58, %s59
      %p70 = scmp.eq.s32.totalorder %s24, 0
      %p71 = por %p69, %p70
      %p72 = scmp.ne.s32.totalorder %s58, %s59
      %p73 = scmp.eq.s32.totalorder %s25, 1
      %p74 = por %p72, %p73
      %p76 = scmp.ne.s32.totalorder %s59, %s75
      %p77 = scmp.eq.s32.totalorder %s25, 0
      %p78 = por %p76, %p77
      %s80 = sadd.s32 %s79, 1
      %p83 = scmp.eq.s32.totalorder %s19, 1
      %p84 = scmp.ne.s32.totalorder %s79, %s81
      %p85 = scmp.eq.s32.totalorder %s19, 0
      %p86 = por %p84, %p85
      %p87 = scmp.ne.s32.totalorder %s79, %s81
      %p88 = scmp.eq.s32.totalorder %s24, 1
      %p89 = por %p87, %p88
      %p90 = scmp.ne.s32.totalorder %s81, %s82
      %p91 = scmp.eq.s32.totalorder %s24, 0
      %p92 = por %p90, %p91
      %p93 = scmp.ne.s32.totalorder %s81, %s82
      %p94 = scmp.eq.s32.totalorder %s25, 1
      %p95 = por %p93, %p94
      %p97 = scmp.ne.s32.totalorder %s82, %s96
      %p98 = scmp.eq.s32.totalorder %s25, 0
      %p99 = por %p97, %p98
      %s101 = sadd.s32 %s100, 1
      %p104 = scmp.eq.s32.totalorder %s19, 1
      %p105 = scmp.ne.s32.totalorder %s100, %s102
      %p106 = scmp.eq.s32.totalorder %s19, 0
      %p107 = por %p105, %p106
      %p108 = scmp.ne.s32.totalorder %s100, %s102
      %p109 = scmp.eq.s32.totalorder %s24, 1
      %p110 = por %p108, %p109
      %p111 = scmp.ne.s32.totalorder %s102, %s103
      %p112 = scmp.eq.s32.totalorder %s24, 0
      %p113 = por %p111, %p112
      %p114 = scmp.ne.s32.totalorder %s102, %s103
      %p115 = scmp.eq.s32.totalorder %s25, 1
      %p116 = por %p114, %p115
      %p118 = scmp.ne.s32.totalorder %s103, %s117
      %p119 = scmp.eq.s32.totalorder %s25, 0
      %p120 = por %p118, %p119
      %s121 = ssub.s32 %s19, %s26
      %p122 = scmp.eq.s32.totalorder %s121, 0
      %s124 = sadd.s32 %s123, 1
      %s125 = scalar_select %p122, %s123, %s124
      %p128 = pneg %p122
      %p129 = scmp.eq.s32.totalorder %s19, 1
      %p130 = por %p128, %p129
      %p131 = scmp.ne.s32.totalorder %s123, %s126
      %p132 = scmp.eq.s32.totalorder %s19, 0
      %p133 = por %p131, %p132
      %p134 = scmp.ne.s32.totalorder %s123, %s126
      %p135 = scmp.eq.s32.totalorder %s24, 1
      %p136 = por %p134, %p135
      %p137 = scmp.ne.s32.totalorder %s126, %s127
      %p138 = scmp.eq.s32.totalorder %s24, 0
      %p139 = por %p137, %p138
      %p140 = scmp.ne.s32.totalorder %s126, %s127
      %p141 = scmp.eq.s32.totalorder %s25, 1
      %p142 = por %p140, %p141
      %p144 = scmp.ne.s32.totalorder %s127, %s143
      %p145 = scmp.eq.s32.totalorder %s25, 0
      %p146 = por %p144, %p145
      %p147 = scmp.le.s32.totalorder 1, %s19
      %p148 = scmp.lt.s32.totalorder %s19, 3
      %p149 = pnand %p147, %p148
      %p150 = pneg %p149
      // Predicated region
      $region9: #{tpu_custom_call.1} parent=5 // pred_check
        _
      $region10: #{tpu_custom_call.1} parent=5 // pred_check_branch
        %152 = sbr.rel (%p149) target = $region12
      $region11: #{tpu_custom_call.1} parent=5 // pred_region
        %s153 = ssub.s32 %s19, 1
        // Predicated region
        $region13: #{tpu_custom_call.1} parent=11 // pred_check
          %p154 = pneg %p92
        $region14: #{tpu_custom_call.1} parent=11 // pred_check_branch
          %156 = sbr.rel (%p154) target = $region16
        $region15: #{tpu_custom_call.1} parent=11 // pred_region
          %s158 = ssub.s32 2048, 2048
          %159 = vsyncadd [#allocation7], %s158
          %s160 = sshll.u32 [#allocation8], 4
          %s161 = int_to_ptr.vmem [resolvable:$true] %s160
          %166 = dma.hbm_to_vmem [thread:$0]  %s2, 2048, %s161, [#allocation7], 128, 128, 8
        $region16: #{tpu_custom_call.1} parent=11 // pred_fallthru
          _
        // Predicated region
        $region17: #{tpu_custom_call.1} parent=11 // pred_check
          %p167 = pneg %p113
        $region18: #{tpu_custom_call.1} parent=11 // pred_check_branch
          %169 = sbr.rel (%p167) target = $region20
        $region19: #{tpu_custom_call.1} parent=11 // pred_region
          _
        $region20: #{tpu_custom_call.1} parent=11 // pred_fallthru
          _
      $region12: #{tpu_custom_call.1} parent=5 // pred_fallthru
        _
      %p170 = scmp.lt.s32.totalorder %s19, 2
      // Predicated region
      $region21: #{tpu_custom_call.1} parent=5 // pred_check
        %p171 = pneg %p170
      $region22: #{tpu_custom_call.1} parent=5 // pred_check_branch
        %173 = sbr.rel (%p171) target = $region24
      $region23: #{tpu_custom_call.1} parent=5 // pred_region
        // Predicated region
        $region25: #{tpu_custom_call.1} parent=23 // pred_check
          %p174 = pneg %p39
        $region26: #{tpu_custom_call.1} parent=23 // pred_check_branch
          %176 = sbr.rel (%p174) target = $region28
        $region27: #{tpu_custom_call.1} parent=23 // pred_region
          %s177 = sand.u32 %s29, 1
          %s178 = scalar_lea.sflag [#allocation4], %s177
          %s179 = sand.u32 %s29, 1
          %s180 = smul.addr %s179, 16
          %s181 = scalar_lea.vmem [#allocation3], %s180
          %s182 = smul.u32 16, %s19
          %s184 = ssub.s32 256, 256
          %185 = vsyncadd %s178, %s184
          %s186 = smul.addr %s182, 16
          %s187 = scalar_lea.hbm %s0, %s186
          %s188 = sshll.u32 %s181, 4
          %s189 = int_to_ptr.vmem [resolvable:$true] %s188
          %194 = dma.hbm_to_vmem [thread:$0]  %s187, 256, %s189, %s178, 16, 16, 1
        $region28: #{tpu_custom_call.1} parent=23 // pred_fallthru
          _
        // Predicated region
        $region29: #{tpu_custom_call.1} parent=23 // pred_check
          %p195 = pneg %p65
        $region30: #{tpu_custom_call.1} parent=23 // pred_check_branch
          %197 = sbr.rel (%p195) target = $region32
        $region31: #{tpu_custom_call.1} parent=23 // pred_region
          %s198 = sand.u32 %s19, 1
          %s199 = scalar_lea.sflag [#allocation7], %s198
          %s200 = sand.u32 %s55, 1
          %s201 = smul.addr %s200, 128
          %s202 = scalar_lea.vmem [#allocation6], %s201
          %s203 = smul.u32 16, %s19
          %s205 = ssub.s32 2048, 2048
          %206 = vsyncadd %s199, %s205
          %s207 = smul.addr %s203, 128
          %s208 = scalar_lea.hbm %s1, %s207
          %s209 = sshll.u32 %s202, 4
          %s210 = int_to_ptr.vmem [resolvable:$true] %s209
          %215 = dma.hbm_to_vmem [thread:$0]  %s208, 2048, %s210, %s199, 128, 128, 8
        $region32: #{tpu_custom_call.1} parent=23 // pred_fallthru
          _
      $region24: #{tpu_custom_call.1} parent=5 // pred_fallthru
        _
      %p216 = scmp.le.s32.totalorder 1, %s19
      %p217 = scmp.lt.s32.totalorder %s19, 3
      %p218 = pnand %p216, %p217
      %p219 = pneg %p218
      // Predicated region
      $region33: #{tpu_custom_call.1} parent=5 // pred_check
        _
      $region34: #{tpu_custom_call.1} parent=5 // pred_check_branch
        %221 = sbr.rel (%p218) target = $region36
      $region35: #{tpu_custom_call.1} parent=5 // pred_region
        %s222 = ssub.s32 %s19, 1
        %s223 = sand.u32 %s32, 1
        %s224 = scalar_lea.sflag [#allocation4], %s223
        %s225 = sand.u32 %s32, 1
        %s226 = smul.addr %s225, 16
        %s227 = scalar_lea.vmem [#allocation3], %s226
        // Predicated region
        $region37: #{tpu_custom_call.1} parent=35 // pred_check
          %p228 = pneg %p45
        $region38: #{tpu_custom_call.1} parent=35 // pred_check_branch
          %230 = sbr.rel (%p228) target = $region40
        $region39: #{tpu_custom_call.1} parent=35 // pred_region
          %231 = dma.done %s224, 256
        $region40: #{tpu_custom_call.1} parent=35 // pred_fallthru
          _
        %s232 = sand.u32 %s24, 1
        %s233 = scalar_lea.sflag [#allocation7], %s232
        %s234 = sand.u32 %s58, 1
        %s235 = smul.addr %s234, 128
        %s236 = scalar_lea.vmem [#allocation6], %s235
        // Predicated region
        $region41: #{tpu_custom_call.1} parent=35 // pred_check
          %p237 = pneg %p71
        $region42: #{tpu_custom_call.1} parent=35 // pred_check_branch
          %239 = sbr.rel (%p237) target = $region44
        $region43: #{tpu_custom_call.1} parent=35 // pred_region
          %240 = dma.done %s233, 2048
        $region44: #{tpu_custom_call.1} parent=35 // pred_fallthru
          _
        // Predicated region
        $region45: #{tpu_custom_call.1} parent=35 // pred_check
          %p241 = pneg %p92
        $region46: #{tpu_custom_call.1} parent=35 // pred_check_branch
          %243 = sbr.rel (%p241) target = $region48
        $region47: #{tpu_custom_call.1} parent=35 // pred_region
          %244 = dma.done [#allocation7], 2048
        $region48: #{tpu_custom_call.1} parent=35 // pred_fallthru
          _
        %s245 = sand.u32 %s32, 1
        %s246 = scalar_lea.sflag [#allocation4], %s245
        %s247 = sand.u32 %s32, 1
        %s248 = smul.addr %s247, 16
        %s249 = scalar_lea.vmem [#allocation3], %s248
        %p250 = pneg %p45
        %p251 = pneg %p42
        %s252 = sand.u32 %s24, 1
        %s253 = scalar_lea.sflag [#allocation7], %s252
        %s254 = sand.u32 %s58, 1
        %s255 = smul.addr %s254, 128
        %s256 = scalar_lea.vmem [#allocation6], %s255
        %p257 = pneg %p71
        %p258 = pneg %p68
        %p259 = pneg %p92
        %p260 = pneg %p89
        %p261 = pneg %p113
        %p262 = pneg %p110
        %p263 = pneg %p139
        %p264 = pneg %p136
        %s265 = sand.u32 %s126, 1
        %s266 = scalar_lea.sflag [#allocation5], %s265
        %s267 = sand.u32 %s126, 1
        %s268 = smul.addr %s267, 16
        %s269 = scalar_lea.vmem [#allocation9], %s268
        %s270 = smul.u32 16, %s24
        %s271 = smul.u32 16, %s24
        %s272 = smul.u32 2, %s24
        %v273 = vld [vmem:[%s227] sm:$0x1]
        %v274 = vld [vmem:[%s227 + $0x1] sm:$0x1]
        %v275 = vld [vmem:[%s227 + $0x2] sm:$0x1]
        %v276 = vld [vmem:[%s227 + $0x3] sm:$0x1]
        %v277 = vld [vmem:[%s227 + $0x4] sm:$0x1]
        %v278 = vld [vmem:[%s227 + $0x5] sm:$0x1]
        %v279 = vld [vmem:[%s227 + $0x6] sm:$0x1]
        %v280 = vld [vmem:[%s227 + $0x7] sm:$0x1]
        %v281 = vld [vmem:[%s227 + $0x8] sm:$0x1]
        %v282 = vld [vmem:[%s227 + $0x9] sm:$0x1]
        %v283 = vld [vmem:[%s227 + $0xa] sm:$0x1]
        %v284 = vld [vmem:[%s227 + $0xb] sm:$0x1]
        %v285 = vld [vmem:[%s227 + $0xc] sm:$0x1]
        %v286 = vld [vmem:[%s227 + $0xd] sm:$0x1]
        %v287 = vld [vmem:[%s227 + $0xe] sm:$0x1]
        %v288 = vld [vmem:[%s227 + $0xf] sm:$0x1]
        %v289 = vld [vmem:[%s236] sm:$0xff]
        %v290 = vld [vmem:[%s236 + $0x8] sm:$0xff]
        %v291 = vld [vmem:[%s236 + $0x10] sm:$0xff]
        %v292 = vld [vmem:[%s236 + $0x18] sm:$0xff]
        %v293 = vld [vmem:[%s236 + $0x20] sm:$0xff]
        %v294 = vld [vmem:[%s236 + $0x28] sm:$0xff]
        %v295 = vld [vmem:[%s236 + $0x30] sm:$0xff]
        %v296 = vld [vmem:[%s236 + $0x38] sm:$0xff]
        %v297 = vld [vmem:[%s236 + $0x40] sm:$0xff]
        %v298 = vld [vmem:[%s236 + $0x48] sm:$0xff]
        %v299 = vld [vmem:[%s236 + $0x50] sm:$0xff]
        %v300 = vld [vmem:[%s236 + $0x58] sm:$0xff]
        %v301 = vld [vmem:[%s236 + $0x60] sm:$0xff]
        %v302 = vld [vmem:[%s236 + $0x68] sm:$0xff]
        %v303 = vld [vmem:[%s236 + $0x70] sm:$0xff]
        %v304 = vld [vmem:[%s236 + $0x78] sm:$0xff]
        %305 = vmatprep.subr.mxu0 0.0
        %306 = vmatpush1.xpose.msra.mxu0 %v289
        %307 = vmatprep.subr.mxu0 0.0
        %308 = vmatpush1.xpose.msra.mxu0 0.0
        %309 = vmatprep.subr.mxu0 0.0
        %310 = vmatpush1.xpose.msra.mxu0 0.0
        %311 = vmatprep.subr.mxu0 0.0
        %312 = vmatpush1.xpose.msra.mxu0 0.0
        %313 = vmatprep.subr.mxu0 0.0
        %314 = vmatpush1.xpose.msra.mxu0 0.0
        %315 = vmatprep.subr.mxu0 0.0
        %316 = vmatpush1.xpose.msra.mxu0 0.0
        %317 = vmatprep.subr.mxu0 0.0
        %318 = vmatpush1.xpose.msra.mxu0 0.0
        %319 = vmatprep.subr.mxu0 0.0
        %320 = vmatpush1.xpose.msra.mxu0 0.0
        %321 = vmatprep.subr.mxu0 0.0
        %322 = vmatpush1.xpose.msra.mxu0 0.0
        %323 = vmatprep.subr.mxu0 0.0
        %324 = vmatpush1.xpose.msra.mxu0 0.0
        %325 = vmatprep.subr.mxu0 0.0
        %326 = vmatpush1.xpose.msra.mxu0 0.0
        %327 = vmatprep.subr.mxu0 0.0
        %328 = vmatpush1.xpose.msra.mxu0 0.0
        %329 = vmatprep.subr.mxu0 0.0
        %330 = vmatpush1.xpose.msra.mxu0 0.0
        %331 = vmatprep.subr.mxu0 0.0
        %332 = vmatpush1.xpose.msra.mxu0 0.0
        %333 = vmatprep.subr.mxu0 0.0
        %334 = vmatpush1.xpose.msra.mxu0 0.0
        %335 = vmatprep.subr.mxu0 0.0
        %336 = vmatpush1.xpose.msra.mxu0 0.0
        %337 = vmatprep.subr.mxu0 0.0
        %338 = vmatpush1.xpose.msra.mxu0 0.0
        %339 = vmatprep.subr.mxu0 0.0
        %340 = vmatpush1.xpose.msra.mxu0 0.0
        %341 = vmatprep.subr.mxu0 0.0
        %342 = vmatpush1.xpose.msra.mxu0 0.0
        %343 = vmatprep.subr.mxu0 0.0
        %344 = vmatpush1.xpose.msra.mxu0 0.0
        %345 = vmatprep.subr.mxu0 0.0
        %346 = vmatpush1.xpose.msra.mxu0 0.0
        %347 = vmatprep.subr.mxu0 0.0
        %348 = vmatpush1.xpose.msra.mxu0 0.0
        %349 = vmatprep.subr.mxu0 0.0
        %350 = vmatpush1.xpose.msra.mxu0 0.0
        %351 = vmatprep.subr.mxu0 0.0
        %352 = vmatpush1.xpose.msra.mxu0 0.0
        %353 = vmatprep.subr.mxu0 0.0
        %354 = vmatpush1.xpose.msra.mxu0 0.0
        %355 = vmatprep.subr.mxu0 0.0
        %356 = vmatpush1.xpose.msra.mxu0 0.0
        %357 = vmatprep.subr.mxu0 0.0
        %358 = vmatpush1.xpose.msra.mxu0 0.0
        %359 = vmatprep.subr.mxu0 0.0
        %360 = vmatpush1.xpose.msra.mxu0 0.0
        %361 = vmatprep.subr.mxu0 0.0
        %362 = vmatpush1.xpose.msra.mxu0 0.0
        %363 = vmatprep.subr.mxu0 0.0
        %364 = vmatpush1.xpose.msra.mxu0 0.0
        %365 = vmatprep.subr.mxu0 0.0
        %366 = vmatpush1.xpose.msra.mxu0 0.0
        %367 = vmatprep.subr.mxu0 0.0
        %368 = vmatpush1.xpose.msra.mxu0 0.0
        %369 = vmatprep.mubr.f32.mxu0 0.0
        %370 = vmatmul.mubr.f32.gmra.mrb[0].mxu0 %v273
        %v371 = vpop.f32.mrb[0].mxu0
        %v372 = vadd.f32 0.0, %v371
        %v373 = vpop.f32.mrb[0].mxu0
        %374 = vdwg.mxu0
        %375 = vmatprep.subr.mxu0 0.0
        %376 = vmatpush1.xpose.msra.mxu0 %v290
        %377 = vmatprep.subr.mxu0 0.0
        %378 = vmatpush1.xpose.msra.mxu0 0.0
        %379 = vmatprep.subr.mxu0 0.0
        %380 = vmatpush1.xpose.msra.mxu0 0.0
        %381 = vmatprep.subr.mxu0 0.0
        %382 = vmatpush1.xpose.msra.mxu0 0.0
        %383 = vmatprep.subr.mxu0 0.0
        %384 = vmatpush1.xpose.msra.mxu0 0.0
        %385 = vmatprep.subr.mxu0 0.0
        %386 = vmatpush1.xpose.msra.mxu0 0.0
        %387 = vmatprep.subr.mxu0 0.0
        %388 = vmatpush1.xpose.msra.mxu0 0.0
        %389 = vmatprep.subr.mxu0 0.0
        %390 = vmatpush1.xpose.msra.mxu0 0.0
        %391 = vmatprep.subr.mxu0 0.0
        %392 = vmatpush1.xpose.msra.mxu0 0.0
        %393 = vmatprep.subr.mxu0 0.0
        %394 = vmatpush1.xpose.msra.mxu0 0.0
        %395 = vmatprep.subr.mxu0 0.0
        %396 = vmatpush1.xpose.msra.mxu0 0.0
        %397 = vmatprep.subr.mxu0 0.0
        %398 = vmatpush1.xpose.msra.mxu0 0.0
        %399 = vmatprep.subr.mxu0 0.0
        %400 = vmatpush1.xpose.msra.mxu0 0.0
        %401 = vmatprep.subr.mxu0 0.0
        %402 = vmatpush1.xpose.msra.mxu0 0.0
        %403 = vmatprep.subr.mxu0 0.0
        %404 = vmatpush1.xpose.msra.mxu0 0.0
        %405 = vmatprep.subr.mxu0 0.0
        %406 = vmatpush1.xpose.msra.mxu0 0.0
        %407 = vmatprep.subr.mxu0 0.0
        %408 = vmatpush1.xpose.msra.mxu0 0.0
        %409 = vmatprep.subr.mxu0 0.0
        %410 = vmatpush1.xpose.msra.mxu0 0.0
        %411 = vmatprep.subr.mxu0 0.0
        %412 = vmatpush1.xpose.msra.mxu0 0.0
        %413 = vmatprep.subr.mxu0 0.0
        %414 = vmatpush1.xpose.msra.mxu0 0.0
        %415 = vmatprep.subr.mxu0 0.0
        %416 = vmatpush1.xpose.msra.mxu0 0.0
        %417 = vmatprep.subr.mxu0 0.0
        %418 = vmatpush1.xpose.msra.mxu0 0.0
        %419 = vmatprep.subr.mxu0 0.0
        %420 = vmatpush1.xpose.msra.mxu0 0.0
        %421 = vmatprep.subr.mxu0 0.0
        %422 = vmatpush1.xpose.msra.mxu0 0.0
        %423 = vmatprep.subr.mxu0 0.0
        %424 = vmatpush1.xpose.msra.mxu0 0.0
        %425 = vmatprep.subr.mxu0 0.0
        %426 = vmatpush1.xpose.msra.mxu0 0.0
        %427 = vmatprep.subr.mxu0 0.0
        %428 = vmatpush1.xpose.msra.mxu0 0.0
        %429 = vmatprep.subr.mxu0 0.0
        %430 = vmatpush1.xpose.msra.mxu0 0.0
        %431 = vmatprep.subr.mxu0 0.0
        %432 = vmatpush1.xpose.msra.mxu0 0.0
        %433 = vmatprep.subr.mxu0 0.0
        %434 = vmatpush1.xpose.msra.mxu0 0.0
        %435 = vmatprep.subr.mxu0 0.0
        %436 = vmatpush1.xpose.msra.mxu0 0.0
        %437 = vmatprep.subr.mxu0 0.0
        %438 = vmatpush1.xpose.msra.mxu0 0.0
        %439 = vmatprep.mubr.f32.mxu0 0.0
        %440 = vmatmul.mubr.f32.gmra.mrb[0].mxu0 %v274
        %v441 = vpop.f32.mrb[0].mxu0
        %v442 = vadd.f32 0.0, %v441
        %v443 = vpop.f32.mrb[0].mxu0
        %444 = vdwg.mxu0
        %445 = vmatprep.subr.mxu0 0.0
        %446 = vmatpush1.xpose.msra.mxu0 %v291
        %447 = vmatprep.subr.mxu0 0.0
        %448 = vmatpush1.xpose.msra.mxu0 0.0
        %449 = vmatprep.subr.mxu0 0.0
        %450 = vmatpush1.xpose.msra.mxu0 0.0
        %451 = vmatprep.subr.mxu0 0.0
        %452 = vmatpush1.xpose.msra.mxu0 0.0
        %453 = vmatprep.subr.mxu0 0.0
        %454 = vmatpush1.xpose.msra.mxu0 0.0
        %455 = vmatprep.subr.mxu0 0.0
        %456 = vmatpush1.xpose.msra.mxu0 0.0
        %457 = vmatprep.subr.mxu0 0.0
        %458 = vmatpush1.xpose.msra.mxu0 0.0
        %459 = vmatprep.subr.mxu0 0.0
        %460 = vmatpush1.xpose.msra.mxu0 0.0
        %461 = vmatprep.subr.mxu0 0.0
        %462 = vmatpush1.xpose.msra.mxu0 0.0
        %463 = vmatprep.subr.mxu0 0.0
        %464 = vmatpush1.xpose.msra.mxu0 0.0
        %465 = vmatprep.subr.mxu0 0.0
        %466 = vmatpush1.xpose.msra.mxu0 0.0
        %467 = vmatprep.subr.mxu0 0.0
        %468 = vmatpush1.xpose.msra.mxu0 0.0
        %469 = vmatprep.subr.mxu0 0.0
        %470 = vmatpush1.xpose.msra.mxu0 0.0
        %471 = vmatprep.subr.mxu0 0.0
        %472 = vmatpush1.xpose.msra.mxu0 0.0
        %473 = vmatprep.subr.mxu0 0.0
        %474 = vmatpush1.xpose.msra.mxu0 0.0
        %475 = vmatprep.subr.mxu0 0.0
        %476 = vmatpush1.xpose.msra.mxu0 0.0
        %477 = vmatprep.subr.mxu0 0.0
        %478 = vmatpush1.xpose.msra.mxu0 0.0
        %479 = vmatprep.subr.mxu0 0.0
        %480 = vmatpush1.xpose.msra.mxu0 0.0
        %481 = vmatprep.subr.mxu0 0.0
        %482 = vmatpush1.xpose.msra.mxu0 0.0
        %483 = vmatprep.subr.mxu0 0.0
        %484 = vmatpush1.xpose.msra.mxu0 0.0
        %485 = vmatprep.subr.mxu0 0.0
        %486 = vmatpush1.xpose.msra.mxu0 0.0
        %487 = vmatprep.subr.mxu0 0.0
        %488 = vmatpush1.xpose.msra.mxu0 0.0
        %489 = vmatprep.subr.mxu0 0.0
        %490 = vmatpush1.xpose.msra.mxu0 0.0
        %491 = vmatprep.subr.mxu0 0.0
        %492 = vmatpush1.xpose.msra.mxu0 0.0
        %493 = vmatprep.subr.mxu0 0.0
        %494 = vmatpush1.xpose.msra.mxu0 0.0
        %495 = vmatprep.subr.mxu0 0.0
        %496 = vmatpush1.xpose.msra.mxu0 0.0
        %497 = vmatprep.subr.mxu0 0.0
        %498 = vmatpush1.xpose.msra.mxu0 0.0
        %499 = vmatprep.subr.mxu0 0.0
        %500 = vmatpush1.xpose.msra.mxu0 0.0
        %501 = vmatprep.subr.mxu0 0.0
        %502 = vmatpush1.xpose.msra.mxu0 0.0
        %503 = vmatprep.subr.mxu0 0.0
        %504 = vmatpush1.xpose.msra.mxu0 0.0
        %505 = vmatprep.subr.mxu0 0.0
        %506 = vmatpush1.xpose.msra.mxu0 0.0
        %507 = vmatprep.subr.mxu0 0.0
        %508 = vmatpush1.xpose.msra.mxu0 0.0
        %509 = vmatprep.mubr.f32.mxu0 0.0
        %510 = vmatmul.mubr.f32.gmra.mrb[0].mxu0 %v275
        %v511 = vpop.f32.mrb[0].mxu0
        %v512 = vadd.f32 0.0, %v511
        %v513 = vpop.f32.mrb[0].mxu0
        %514 = vdwg.mxu0
        %515 = vmatprep.subr.mxu0 0.0
        %516 = vmatpush1.xpose.msra.mxu0 %v292
        %517 = vmatprep.subr.mxu0 0.0
        %518 = vmatpush1.xpose.msra.mxu0 0.0
        %519 = vmatprep.subr.mxu0 0.0
        %520 = vmatpush1.xpose.msra.mxu0 0.0
        %521 = vmatprep.subr.mxu0 0.0
        %522 = vmatpush1.xpose.msra.mxu0 0.0
        %523 = vmatprep.subr.mxu0 0.0
        %524 = vmatpush1.xpose.msra.mxu0 0.0
        %525 = vmatprep.subr.mxu0 0.0
        %526 = vmatpush1.xpose.msra.mxu0 0.0
        %527 = vmatprep.subr.mxu0 0.0
        %528 = vmatpush1.xpose.msra.mxu0 0.0
        %529 = vmatprep.subr.mxu0 0.0
        %530 = vmatpush1.xpose.msra.mxu0 0.0
        %531 = vmatprep.subr.mxu0 0.0
        %532 = vmatpush1.xpose.msra.mxu0 0.0
        %533 = vmatprep.subr.mxu0 0.0
        %534 = vmatpush1.xpose.msra.mxu0 0.0
        %535 = vmatprep.subr.mxu0 0.0
        %536 = vmatpush1.xpose.msra.mxu0 0.0
        %537 = vmatprep.subr.mxu0 0.0
        %538 = vmatpush1.xpose.msra.mxu0 0.0
        %539 = vmatprep.subr.mxu0 0.0
        %540 = vmatpush1.xpose.msra.mxu0 0.0
        %541 = vmatprep.subr.mxu0 0.0
        %542 = vmatpush1.xpose.msra.mxu0 0.0
        %543 = vmatprep.subr.mxu0 0.0
        %544 = vmatpush1.xpose.msra.mxu0 0.0
        %545 = vmatprep.subr.mxu0 0.0
        %546 = vmatpush1.xpose.msra.mxu0 0.0
        %547 = vmatprep.subr.mxu0 0.0
        %548 = vmatpush1.xpose.msra.mxu0 0.0
        %549 = vmatprep.subr.mxu0 0.0
        %550 = vmatpush1.xpose.msra.mxu0 0.0
        %551 = vmatprep.subr.mxu0 0.0
        %552 = vmatpush1.xpose.msra.mxu0 0.0
        %553 = vmatprep.subr.mxu0 0.0
        %554 = vmatpush1.xpose.msra.mxu0 0.0
        %555 = vmatprep.subr.mxu0 0.0
        %556 = vmatpush1.xpose.msra.mxu0 0.0
        %557 = vmatprep.subr.mxu0 0.0
        %558 = vmatpush1.xpose.msra.mxu0 0.0
        %559 = vmatprep.subr.mxu0 0.0
        %560 = vmatpush1.xpose.msra.mxu0 0.0
        %561 = vmatprep.subr.mxu0 0.0
        %562 = vmatpush1.xpose.msra.mxu0 0.0
        %563 = vmatprep.subr.mxu0 0.0
        %564 = vmatpush1.xpose.msra.mxu0 0.0
        %565 = vmatprep.subr.mxu0 0.0
        %566 = vmatpush1.xpose.msra.mxu0 0.0
        %567 = vmatprep.subr.mxu0 0.0
        %568 = vmatpush1.xpose.msra.mxu0 0.0
        %569 = vmatprep.subr.mxu0 0.0
        %570 = vmatpush1.xpose.msra.mxu0 0.0
        %571 = vmatprep.subr.mxu0 0.0
        %572 = vmatpush1.xpose.msra.mxu0 0.0
        %573 = vmatprep.subr.mxu0 0.0
        %574 = vmatpush1.xpose.msra.mxu0 0.0
        %575 = vmatprep.subr.mxu0 0.0
        %576 = vmatpush1.xpose.msra.mxu0 0.0
        %577 = vmatprep.subr.mxu0 0.0
        %578 = vmatpush1.xpose.msra.mxu0 0.0
        %579 = vmatprep.mubr.f32.mxu0 0.0
        %580 = vmatmul.mubr.f32.gmra.mrb[0].mxu0 %v276
        %v581 = vpop.f32.mrb[0].mxu0
        %v582 = vadd.f32 0.0, %v581
        %v583 = vpop.f32.mrb[0].mxu0
        %584 = vdwg.mxu0
        %585 = vmatprep.subr.mxu0 0.0
        %586 = vmatpush1.xpose.msra.mxu0 %v293
        %587 = vmatprep.subr.mxu0 0.0
        %588 = vmatpush1.xpose.msra.mxu0 0.0
        %589 = vmatprep.subr.mxu0 0.0
        %590 = vmatpush1.xpose.msra.mxu0 0.0
        %591 = vmatprep.subr.mxu0 0.0
        %592 = vmatpush1.xpose.msra.mxu0 0.0
        %593 = vmatprep.subr.mxu0 0.0
        %594 = vmatpush1.xpose.msra.mxu0 0.0
        %595 = vmatprep.subr.mxu0 0.0
        %596 = vmatpush1.xpose.msra.mxu0 0.0
        %597 = vmatprep.subr.mxu0 0.0
        %598 = vmatpush1.xpose.msra.mxu0 0.0
        %599 = vmatprep.subr.mxu0 0.0
        %600 = vmatpush1.xpose.msra.mxu0 0.0
        %601 = vmatprep.subr.mxu0 0.0
        %602 = vmatpush1.xpose.msra.mxu0 0.0
        %603 = vmatprep.subr.mxu0 0.0
        %604 = vmatpush1.xpose.msra.mxu0 0.0
        %605 = vmatprep.subr.mxu0 0.0
        %606 = vmatpush1.xpose.msra.mxu0 0.0
        %607 = vmatprep.subr.mxu0 0.0
        %608 = vmatpush1.xpose.msra.mxu0 0.0
        %609 = vmatprep.subr.mxu0 0.0
        %610 = vmatpush1.xpose.msra.mxu0 0.0
        %611 = vmatprep.subr.mxu0 0.0
        %612 = vmatpush1.xpose.msra.mxu0 0.0
        %613 = vmatprep.subr.mxu0 0.0
        %614 = vmatpush1.xpose.msra.mxu0 0.0
        %615 = vmatprep.subr.mxu0 0.0
        %616 = vmatpush1.xpose.msra.mxu0 0.0
        %617 = vmatprep.subr.mxu0 0.0
        %618 = vmatpush1.xpose.msra.mxu0 0.0
        %619 = vmatprep.subr.mxu0 0.0
        %620 = vmatpush1.xpose.msra.mxu0 0.0
        %621 = vmatprep.subr.mxu0 0.0
        %622 = vmatpush1.xpose.msra.mxu0 0.0
        %623 = vmatprep.subr.mxu0 0.0
        %624 = vmatpush1.xpose.msra.mxu0 0.0
        %625 = vmatprep.subr.mxu0 0.0
        %626 = vmatpush1.xpose.msra.mxu0 0.0
        %627 = vmatprep.subr.mxu0 0.0
        %628 = vmatpush1.xpose.msra.mxu0 0.0
        %629 = vmatprep.subr.mxu0 0.0
        %630 = vmatpush1.xpose.msra.mxu0 0.0
        %631 = vmatprep.subr.mxu0 0.0
        %632 = vmatpush1.xpose.msra.mxu0 0.0
        %633 = vmatprep.subr.mxu0 0.0
        %634 = vmatpush1.xpose.msra.mxu0 0.0
        %635 = vmatprep.subr.mxu0 0.0
        %636 = vmatpush1.xpose.msra.mxu0 0.0
        %637 = vmatprep.subr.mxu0 0.0
        %638 = vmatpush1.xpose.msra.mxu0 0.0
        %639 = vmatprep.subr.mxu0 0.0
        %640 = vmatpush1.xpose.msra.mxu0 0.0
        %641 = vmatprep.subr.mxu0 0.0
        %642 = vmatpush1.xpose.msra.mxu0 0.0
        %643 = vmatprep.subr.mxu0 0.0
        %644 = vmatpush1.xpose.msra.mxu0 0.0
        %645 = vmatprep.subr.mxu0 0.0
        %646 = vmatpush1.xpose.msra.mxu0 0.0
        %647 = vmatprep.subr.mxu0 0.0
        %648 = vmatpush1.xpose.msra.mxu0 0.0
        %649 = vmatprep.mubr.f32.mxu0 0.0
        %650 = vmatmul.mubr.f32.gmra.mrb[0].mxu0 %v277
        %v651 = vpop.f32.mrb[0].mxu0
        %v652 = vadd.f32 0.0, %v651
        %v653 = vpop.f32.mrb[0].mxu0
        %654 = vdwg.mxu0
        %655 = vmatprep.subr.mxu0 0.0
        %656 = vmatpush1.xpose.msra.mxu0 %v294
        %657 = vmatprep.subr.mxu0 0.0
        %658 = vmatpush1.xpose.msra.mxu0 0.0
        %659 = vmatprep.subr.mxu0 0.0
        %660 = vmatpush1.xpose.msra.mxu0 0.0
        %661 = vmatprep.subr.mxu0 0.0
        %662 = vmatpush1.xpose.msra.mxu0 0.0
        %663 = vmatprep.subr.mxu0 0.0
        %664 = vmatpush1.xpose.msra.mxu0 0.0
        %665 = vmatprep.subr.mxu0 0.0
        %666 = vmatpush1.xpose.msra.mxu0 0.0
        %667 = vmatprep.subr.mxu0 0.0
        %668 = vmatpush1.xpose.msra.mxu0 0.0
        %669 = vmatprep.subr.mxu0 0.0
        %670 = vmatpush1.xpose.msra.mxu0 0.0
        %671 = vmatprep.subr.mxu0 0.0
        %672 = vmatpush1.xpose.msra.mxu0 0.0
        %673 = vmatprep.subr.mxu0 0.0
        %674 = vmatpush1.xpose.msra.mxu0 0.0
        %675 = vmatprep.subr.mxu0 0.0
        %676 = vmatpush1.xpose.msra.mxu0 0.0
        %677 = vmatprep.subr.mxu0 0.0
        %678 = vmatpush1.xpose.msra.mxu0 0.0
        %679 = vmatprep.subr.mxu0 0.0
        %680 = vmatpush1.xpose.msra.mxu0 0.0
        %681 = vmatprep.subr.mxu0 0.0
        %682 = vmatpush1.xpose.msra.mxu0 0.0
        %683 = vmatprep.subr.mxu0 0.0
        %684 = vmatpush1.xpose.msra.mxu0 0.0
        %685 = vmatprep.subr.mxu0 0.0
        %686 = vmatpush1.xpose.msra.mxu0 0.0
        %687 = vmatprep.subr.mxu0 0.0
        %688 = vmatpush1.xpose.msra.mxu0 0.0
        %689 = vmatprep.subr.mxu0 0.0
        %690 = vmatpush1.xpose.msra.mxu0 0.0
        %691 = vmatprep.subr.mxu0 0.0
        %692 = vmatpush1.xpose.msra.mxu0 0.0
        %693 = vmatprep.subr.mxu0 0.0
        %694 = vmatpush1.xpose.msra.mxu0 0.0
        %695 = vmatprep.subr.mxu0 0.0
        %696 = vmatpush1.xpose.msra.mxu0 0.0
        %697 = vmatprep.subr.mxu0 0.0
        %698 = vmatpush1.xpose.msra.mxu0 0.0
        %699 = vmatprep.subr.mxu0 0.0
        %700 = vmatpush1.xpose.msra.mxu0 0.0
        %701 = vmatprep.subr.mxu0 0.0
        %702 = vmatpush1.xpose.msra.mxu0 0.0
        %703 = vmatprep.subr.mxu0 0.0
        %704 = vmatpush1.xpose.msra.mxu0 0.0
        %705 = vmatprep.subr.mxu0 0.0
        %706 = vmatpush1.xpose.msra.mxu0 0.0
        %707 = vmatprep.subr.mxu0 0.0
        %708 = vmatpush1.xpose.msra.mxu0 0.0
        %709 = vmatprep.subr.mxu0 0.0
        %710 = vmatpush1.xpose.msra.mxu0 0.0
        %711 = vmatprep.subr.mxu0 0.0
        %712 = vmatpush1.xpose.msra.mxu0 0.0
        %713 = vmatprep.subr.mxu0 0.0
        %714 = vmatpush1.xpose.msra.mxu0 0.0
        %715 = vmatprep.subr.mxu0 0.0
        %716 = vmatpush1.xpose.msra.mxu0 0.0
        %717 = vmatprep.subr.mxu0 0.0
        %718 = vmatpush1.xpose.msra.mxu0 0.0
        %719 = vmatprep.mubr.f32.mxu0 0.0
        %720 = vmatmul.mubr.f32.gmra.mrb[0].mxu0 %v278
        %v721 = vpop.f32.mrb[0].mxu0
        %v722 = vadd.f32 0.0, %v721
        %v723 = vpop.f32.mrb[0].mxu0
        %724 = vdwg.mxu0
        %725 = vmatprep.subr.mxu0 0.0
        %726 = vmatpush1.xpose.msra.mxu0 %v295
        %727 = vmatprep.subr.mxu0 0.0
        %728 = vmatpush1.xpose.msra.mxu0 0.0
        %729 = vmatprep.subr.mxu0 0.0
        %730 = vmatpush1.xpose.msra.mxu0 0.0
        %731 = vmatprep.subr.mxu0 0.0
        %732 = vmatpush1.xpose.msra.mxu0 0.0
        %733 = vmatprep.subr.mxu0 0.0
        %734 = vmatpush1.xpose.msra.mxu0 0.0
        %735 = vmatprep.subr.mxu0 0.0
        %736 = vmatpush1.xpose.msra.mxu0 0.0
        %737 = vmatprep.subr.mxu0 0.0
        %738 = vmatpush1.xpose.msra.mxu0 0.0
        %739 = vmatprep.subr.mxu0 0.0
        %740 = vmatpush1.xpose.msra.mxu0 0.0
        %741 = vmatprep.subr.mxu0 0.0
        %742 = vmatpush1.xpose.msra.mxu0 0.0
        %743 = vmatprep.subr.mxu0 0.0
        %744 = vmatpush1.xpose.msra.mxu0 0.0
        %745 = vmatprep.subr.mxu0 0.0
        %746 = vmatpush1.xpose.msra.mxu0 0.0
        %747 = vmatprep.subr.mxu0 0.0
        %748 = vmatpush1.xpose.msra.mxu0 0.0
        %749 = vmatprep.subr.mxu0 0.0
        %750 = vmatpush1.xpose.msra.mxu0 0.0
        %751 = vmatprep.subr.mxu0 0.0
        %752 = vmatpush1.xpose.msra.mxu0 0.0
        %753 = vmatprep.subr.mxu0 0.0
        %754 = vmatpush1.xpose.msra.mxu0 0.0
        %755 = vmatprep.subr.mxu0 0.0
        %756 = vmatpush1.xpose.msra.mxu0 0.0
        %757 = vmatprep.subr.mxu0 0.0
        %758 = vmatpush1.xpose.msra.mxu0 0.0
        %759 = vmatprep.subr.mxu0 0.0
        %760 = vmatpush1.xpose.msra.mxu0 0.0
        %761 = vmatprep.subr.mxu0 0.0
        %762 = vmatpush1.xpose.msra.mxu0 0.0
        %763 = vmatprep.subr.mxu0 0.0
        %764 = vmatpush1.xpose.msra.mxu0 0.0
        %765 = vmatprep.subr.mxu0 0.0
        %766 = vmatpush1.xpose.msra.mxu0 0.0
        %767 = vmatprep.subr.mxu0 0.0
        %768 = vmatpush1.xpose.msra.mxu0 0.0
        %769 = vmatprep.subr.mxu0 0.0
        %770 = vmatpush1.xpose.msra.mxu0 0.0
        %771 = vmatprep.subr.mxu0 0.0
        %772 = vmatpush1.xpose.msra.mxu0 0.0
        %773 = vmatprep.subr.mxu0 0.0
        %774 = vmatpush1.xpose.msra.mxu0 0.0
        %775 = vmatprep.subr.mxu0 0.0
        %776 = vmatpush1.xpose.msra.mxu0 0.0
        %777 = vmatprep.subr.mxu0 0.0
        %778 = vmatpush1.xpose.msra.mxu0 0.0
        %779 = vmatprep.subr.mxu0 0.0
        %780 = vmatpush1.xpose.msra.mxu0 0.0
        %781 = vmatprep.subr.mxu0 0.0
        %782 = vmatpush1.xpose.msra.mxu0 0.0
        %783 = vmatprep.subr.mxu0 0.0
        %784 = vmatpush1.xpose.msra.mxu0 0.0
        %785 = vmatprep.subr.mxu0 0.0
        %786 = vmatpush1.xpose.msra.mxu0 0.0
        %787 = vmatprep.subr.mxu0 0.0
        %788 = vmatpush1.xpose.msra.mxu0 0.0
        %789 = vmatprep.mubr.f32.mxu0 0.0
        %790 = vmatmul.mubr.f32.gmra.mrb[0].mxu0 %v279
        %v791 = vpop.f32.mrb[0].mxu0
        %v792 = vadd.f32 0.0, %v791
        %v793 = vpop.f32.mrb[0].mxu0
        %794 = vdwg.mxu0
        %795 = vmatprep.subr.mxu0 0.0
        %796 = vmatpush1.xpose.msra.mxu0 %v296
        %797 = vmatprep.subr.mxu0 0.0
        %798 = vmatpush1.xpose.msra.mxu0 0.0
        %799 = vmatprep.subr.mxu0 0.0
        %800 = vmatpush1.xpose.msra.mxu0 0.0
        %801 = vmatprep.subr.mxu0 0.0
        %802 = vmatpush1.xpose.msra.mxu0 0.0
        %803 = vmatprep.subr.mxu0 0.0
        %804 = vmatpush1.xpose.msra.mxu0 0.0
        %805 = vmatprep.subr.mxu0 0.0
        %806 = vmatpush1.xpose.msra.mxu0 0.0
        %807 = vmatprep.subr.mxu0 0.0
        %808 = vmatpush1.xpose.msra.mxu0 0.0
        %809 = vmatprep.subr.mxu0 0.0
        %810 = vmatpush1.xpose.msra.mxu0 0.0
        %811 = vmatprep.subr.mxu0 0.0
        %812 = vmatpush1.xpose.msra.mxu0 0.0
        %813 = vmatprep.subr.mxu0 0.0
        %814 = vmatpush1.xpose.msra.mxu0 0.0
        %815 = vmatprep.subr.mxu0 0.0
        %816 = vmatpush1.xpose.msra.mxu0 0.0
        %817 = vmatprep.subr.mxu0 0.0
        %818 = vmatpush1.xpose.msra.mxu0 0.0
        %819 = vmatprep.subr.mxu0 0.0
        %820 = vmatpush1.xpose.msra.mxu0 0.0
        %821 = vmatprep.subr.mxu0 0.0
        %822 = vmatpush1.xpose.msra.mxu0 0.0
        %823 = vmatprep.subr.mxu0 0.0
        %824 = vmatpush1.xpose.msra.mxu0 0.0
        %825 = vmatprep.subr.mxu0 0.0
        %826 = vmatpush1.xpose.msra.mxu0 0.0
        %827 = vmatprep.subr.mxu0 0.0
        %828 = vmatpush1.xpose.msra.mxu0 0.0
        %829 = vmatprep.subr.mxu0 0.0
        %830 = vmatpush1.xpose.msra.mxu0 0.0
        %831 = vmatprep.subr.mxu0 0.0
        %832 = vmatpush1.xpose.msra.mxu0 0.0
        %833 = vmatprep.subr.mxu0 0.0
        %834 = vmatpush1.xpose.msra.mxu0 0.0
        %835 = vmatprep.subr.mxu0 0.0
        %836 = vmatpush1.xpose.msra.mxu0 0.0
        %837 = vmatprep.subr.mxu0 0.0
        %838 = vmatpush1.xpose.msra.mxu0 0.0
        %839 = vmatprep.subr.mxu0 0.0
        %840 = vmatpush1.xpose.msra.mxu0 0.0
        %841 = vmatprep.subr.mxu0 0.0
        %842 = vmatpush1.xpose.msra.mxu0 0.0
        %843 = vmatprep.subr.mxu0 0.0
        %844 = vmatpush1.xpose.msra.mxu0 0.0
        %845 = vmatprep.subr.mxu0 0.0
        %846 = vmatpush1.xpose.msra.mxu0 0.0
        %847 = vmatprep.subr.mxu0 0.0
        %848 = vmatpush1.xpose.msra.mxu0 0.0
        %849 = vmatprep.subr.mxu0 0.0
        %850 = vmatpush1.xpose.msra.mxu0 0.0
        %851 = vmatprep.subr.mxu0 0.0
        %852 = vmatpush1.xpose.msra.mxu0 0.0
        %853 = vmatprep.subr.mxu0 0.0
        %854 = vmatpush1.xpose.msra.mxu0 0.0
        %855 = vmatprep.subr.mxu0 0.0
        %856 = vmatpush1.xpose.msra.mxu0 0.0
        %857 = vmatprep.subr.mxu0 0.0
        %858 = vmatpush1.xpose.msra.mxu0 0.0
        %859 = vmatprep.mubr.f32.mxu0 0.0
        %860 = vmatmul.mubr.f32.gmra.mrb[0].mxu0 %v280
        %v861 = vpop.f32.mrb[0].mxu0
        %v862 = vadd.f32 0.0, %v861
        %v863 = vpop.f32.mrb[0].mxu0
        %864 = vdwg.mxu0
        %865 = vmatprep.subr.mxu0 0.0
        %866 = vmatpush1.xpose.msra.mxu0 %v297
        %867 = vmatprep.subr.mxu0 0.0
        %868 = vmatpush1.xpose.msra.mxu0 0.0
        %869 = vmatprep.subr.mxu0 0.0
        %870 = vmatpush1.xpose.msra.mxu0 0.0
        %871 = vmatprep.subr.mxu0 0.0
        %872 = vmatpush1.xpose.msra.mxu0 0.0
        %873 = vmatprep.subr.mxu0 0.0
        %874 = vmatpush1.xpose.msra.mxu0 0.0
        %875 = vmatprep.subr.mxu0 0.0
        %876 = vmatpush1.xpose.msra.mxu0 0.0
        %877 = vmatprep.subr.mxu0 0.0
        %878 = vmatpush1.xpose.msra.mxu0 0.0
        %879 = vmatprep.subr.mxu0 0.0
        %880 = vmatpush1.xpose.msra.mxu0 0.0
        %881 = vmatprep.subr.mxu0 0.0
        %882 = vmatpush1.xpose.msra.mxu0 0.0
        %883 = vmatprep.subr.mxu0 0.0
        %884 = vmatpush1.xpose.msra.mxu0 0.0
        %885 = vmatprep.subr.mxu0 0.0
        %886 = vmatpush1.xpose.msra.mxu0 0.0
        %887 = vmatprep.subr.mxu0 0.0
        %888 = vmatpush1.xpose.msra.mxu0 0.0
        %889 = vmatprep.subr.mxu0 0.0
        %890 = vmatpush1.xpose.msra.mxu0 0.0
        %891 = vmatprep.subr.mxu0 0.0
        %892 = vmatpush1.xpose.msra.mxu0 0.0
        %893 = vmatprep.subr.mxu0 0.0
        %894 = vmatpush1.xpose.msra.mxu0 0.0
        %895 = vmatprep.subr.mxu0 0.0
        %896 = vmatpush1.xpose.msra.mxu0 0.0
        %897 = vmatprep.subr.mxu0 0.0
        %898 = vmatpush1.xpose.msra.mxu0 0.0
        %899 = vmatprep.subr.mxu0 0.0
        %900 = vmatpush1.xpose.msra.mxu0 0.0
        %901 = vmatprep.subr.mxu0 0.0
        %902 = vmatpush1.xpose.msra.mxu0 0.0
        %903 = vmatprep.subr.mxu0 0.0
        %904 = vmatpush1.xpose.msra.mxu0 0.0
        %905 = vmatprep.subr.mxu0 0.0
        %906 = vmatpush1.xpose.msra.mxu0 0.0
        %907 = vmatprep.subr.mxu0 0.0
        %908 = vmatpush1.xpose.msra.mxu0 0.0
        %909 = vmatprep.subr.mxu0 0.0
        %910 = vmatpush1.xpose.msra.mxu0 0.0
        %911 = vmatprep.subr.mxu0 0.0
        %912 = vmatpush1.xpose.msra.mxu0 0.0
        %913 = vmatprep.subr.mxu0 0.0
        %914 = vmatpush1.xpose.msra.mxu0 0.0
        %915 = vmatprep.subr.mxu0 0.0
        %916 = vmatpush1.xpose.msra.mxu0 0.0
        %917 = vmatprep.subr.mxu0 0.0
        %918 = vmatpush1.xpose.msra.mxu0 0.0
        %919 = vmatprep.subr.mxu0 0.0
        %920 = vmatpush1.xpose.msra.mxu0 0.0
        %921 = vmatprep.subr.mxu0 0.0
        %922 = vmatpush1.xpose.msra.mxu0 0.0
        %923 = vmatprep.subr.mxu0 0.0
        %924 = vmatpush1.xpose.msra.mxu0 0.0
        %925 = vmatprep.subr.mxu0 0.0
        %926 = vmatpush1.xpose.msra.mxu0 0.0
        %927 = vmatprep.subr.mxu0 0.0
        %928 = vmatpush1.xpose.msra.mxu0 0.0
        %929 = vmatprep.mubr.f32.mxu0 0.0
        %930 = vmatmul.mubr.f32.gmra.mrb[0].mxu0 %v281
        %v931 = vpop.f32.mrb[0].mxu0
        %v932 = vadd.f32 0.0, %v931
        %v933 = vpop.f32.mrb[0].mxu0
        %934 = vdwg.mxu0
        %935 = vmatprep.subr.mxu0 0.0
        %936 = vmatpush1.xpose.msra.mxu0 %v298
        %937 = vmatprep.subr.mxu0 0.0
        %938 = vmatpush1.xpose.msra.mxu0 0.0
        %939 = vmatprep.subr.mxu0 0.0
        %940 = vmatpush1.xpose.msra.mxu0 0.0
        %941 = vmatprep.subr.mxu0 0.0
        %942 = vmatpush1.xpose.msra.mxu0 0.0
        %943 = vmatprep.subr.mxu0 0.0
        %944 = vmatpush1.xpose.msra.mxu0 0.0
        %945 = vmatprep.subr.mxu0 0.0
        %946 = vmatpush1.xpose.msra.mxu0 0.0
        %947 = vmatprep.subr.mxu0 0.0
        %948 = vmatpush1.xpose.msra.mxu0 0.0
        %949 = vmatprep.subr.mxu0 0.0
        %950 = vmatpush1.xpose.msra.mxu0 0.0
        %951 = vmatprep.subr.mxu0 0.0
        %952 = vmatpush1.xpose.msra.mxu0 0.0
        %953 = vmatprep.subr.mxu0 0.0
        %954 = vmatpush1.xpose.msra.mxu0 0.0
        %955 = vmatprep.subr.mxu0 0.0
        %956 = vmatpush1.xpose.msra.mxu0 0.0
        %957 = vmatprep.subr.mxu0 0.0
        %958 = vmatpush1.xpose.msra.mxu0 0.0
        %959 = vmatprep.subr.mxu0 0.0
        %960 = vmatpush1.xpose.msra.mxu0 0.0
        %961 = vmatprep.subr.mxu0 0.0
        %962 = vmatpush1.xpose.msra.mxu0 0.0
        %963 = vmatprep.subr.mxu0 0.0
        %964 = vmatpush1.xpose.msra.mxu0 0.0
        %965 = vmatprep.subr.mxu0 0.0
        %966 = vmatpush1.xpose.msra.mxu0 0.0
        %967 = vmatprep.subr.mxu0 0.0
        %968 = vmatpush1.xpose.msra.mxu0 0.0
        %969 = vmatprep.subr.mxu0 0.0
        %970 = vmatpush1.xpose.msra.mxu0 0.0
        %971 = vmatprep.subr.mxu0 0.0
        %972 = vmatpush1.xpose.msra.mxu0 0.0
        %973 = vmatprep.subr.mxu0 0.0
        %974 = vmatpush1.xpose.msra.mxu0 0.0
        %975 = vmatprep.subr.mxu0 0.0
        %976 = vmatpush1.xpose.msra.mxu0 0.0
        %977 = vmatprep.subr.mxu0 0.0
        %978 = vmatpush1.xpose.msra.mxu0 0.0
        %979 = vmatprep.subr.mxu0 0.0
        %980 = vmatpush1.xpose.msra.mxu0 0.0
        %981 = vmatprep.subr.mxu0 0.0
        %982 = vmatpush1.xpose.msra.mxu0 0.0
        %983 = vmatprep.subr.mxu0 0.0
        %984 = vmatpush1.xpose.msra.mxu0 0.0
        %985 = vmatprep.subr.mxu0 0.0
        %986 = vmatpush1.xpose.msra.mxu0 0.0
        %987 = vmatprep.subr.mxu0 0.0
        %988 = vmatpush1.xpose.msra.mxu0 0.0
        %989 = vmatprep.subr.mxu0 0.0
        %990 = vmatpush1.xpose.msra.mxu0 0.0
        %991 = vmatprep.subr.mxu0 0.0
        %992 = vmatpush1.xpose.msra.mxu0 0.0
        %993 = vmatprep.subr.mxu0 0.0
        %994 = vmatpush1.xpose.msra.mxu0 0.0
        %995 = vmatprep.subr.mxu0 0.0
        %996 = vmatpush1.xpose.msra.mxu0 0.0
        %997 = vmatprep.subr.mxu0 0.0
        %998 = vmatpush1.xpose.msra.mxu0 0.0
        %999 = vmatprep.mubr.f32.mxu0 0.0
        %1000 = vmatmul.mubr.f32.gmra.mrb[0].mxu0 %v282
        %v1001 = vpop.f32.mrb[0].mxu0
        %v1002 = vadd.f32 0.0, %v1001
        %v1003 = vpop.f32.mrb[0].mxu0
        %1004 = vdwg.mxu0
        %1005 = vmatprep.subr.mxu0 0.0
        %1006 = vmatpush1.xpose.msra.mxu0 %v299
        %1007 = vmatprep.subr.mxu0 0.0
        %1008 = vmatpush1.xpose.msra.mxu0 0.0
        %1009 = vmatprep.subr.mxu0 0.0
        %1010 = vmatpush1.xpose.msra.mxu0 0.0
        %1011 = vmatprep.subr.mxu0 0.0
        %1012 = vmatpush1.xpose.msra.mxu0 0.0
        %1013 = vmatprep.subr.mxu0 0.0
        %1014 = vmatpush1.xpose.msra.mxu0 0.0
        %1015 = vmatprep.subr.mxu0 0.0
        %1016 = vmatpush1.xpose.msra.mxu0 0.0
        %1017 = vmatprep.subr.mxu0 0.0
        %1018 = vmatpush1.xpose.msra.mxu0 0.0
        %1019 = vmatprep.subr.mxu0 0.0
        %1020 = vmatpush1.xpose.msra.mxu0 0.0
        %1021 = vmatprep.subr.mxu0 0.0
        %1022 = vmatpush1.xpose.msra.mxu0 0.0
        %1023 = vmatprep.subr.mxu0 0.0
        %1024 = vmatpush1.xpose.msra.mxu0 0.0
        %1025 = vmatprep.subr.mxu0 0.0
        %1026 = vmatpush1.xpose.msra.mxu0 0.0
        %1027 = vmatprep.subr.mxu0 0.0
        %1028 = vmatpush1.xpose.msra.mxu0 0.0
        %1029 = vmatprep.subr.mxu0 0.0
        %1030 = vmatpush1.xpose.msra.mxu0 0.0
        %1031 = vmatprep.subr.mxu0 0.0
        %1032 = vmatpush1.xpose.msra.mxu0 0.0
        %1033 = vmatprep.subr.mxu0 0.0
        %1034 = vmatpush1.xpose.msra.mxu0 0.0
        %1035 = vmatprep.subr.mxu0 0.0
        %1036 = vmatpush1.xpose.msra.mxu0 0.0
        %1037 = vmatprep.subr.mxu0 0.0
        %1038 = vmatpush1.xpose.msra.mxu0 0.0
        %1039 = vmatprep.subr.mxu0 0.0
        %1040 = vmatpush1.xpose.msra.mxu0 0.0
        %1041 = vmatprep.subr.mxu0 0.0
        %1042 = vmatpush1.xpose.msra.mxu0 0.0
        %1043 = vmatprep.subr.mxu0 0.0
        %1044 = vmatpush1.xpose.msra.mxu0 0.0
        %1045 = vmatprep.subr.mxu0 0.0
        %1046 = vmatpush1.xpose.msra.mxu0 0.0
        %1047 = vmatprep.subr.mxu0 0.0
        %1048 = vmatpush1.xpose.msra.mxu0 0.0
        %1049 = vmatprep.subr.mxu0 0.0
        %1050 = vmatpush1.xpose.msra.mxu0 0.0
        %1051 = vmatprep.subr.mxu0 0.0
        %1052 = vmatpush1.xpose.msra.mxu0 0.0
        %1053 = vmatprep.subr.mxu0 0.0
        %1054 = vmatpush1.xpose.msra.mxu0 0.0
        %1055 = vmatprep.subr.mxu0 0.0
        %1056 = vmatpush1.xpose.msra.mxu0 0.0
        %1057 = vmatprep.subr.mxu0 0.0
        %1058 = vmatpush1.xpose.msra.mxu0 0.0
        %1059 = vmatprep.subr.mxu0 0.0
        %1060 = vmatpush1.xpose.msra.mxu0 0.0
        %1061 = vmatprep.subr.mxu0 0.0
        %1062 = vmatpush1.xpose.msra.mxu0 0.0
        %1063 = vmatprep.subr.mxu0 0.0
        %1064 = vmatpush1.xpose.msra.mxu0 0.0
        %1065 = vmatprep.subr.mxu0 0.0
        %1066 = vmatpush1.xpose.msra.mxu0 0.0
        %1067 = vmatprep.subr.mxu0 0.0
        %1068 = vmatpush1.xpose.msra.mxu0 0.0
        %1069 = vmatprep.mubr.f32.mxu0 0.0
        %1070 = vmatmul.mubr.f32.gmra.mrb[0].mxu0 %v283
        %v1071 = vpop.f32.mrb[0].mxu0
        %v1072 = vadd.f32 0.0, %v1071
        %v1073 = vpop.f32.mrb[0].mxu0
        %1074 = vdwg.mxu0
        %1075 = vmatprep.subr.mxu0 0.0
        %1076 = vmatpush1.xpose.msra.mxu0 %v300
        %1077 = vmatprep.subr.mxu0 0.0
        %1078 = vmatpush1.xpose.msra.mxu0 0.0
        %1079 = vmatprep.subr.mxu0 0.0
        %1080 = vmatpush1.xpose.msra.mxu0 0.0
        %1081 = vmatprep.subr.mxu0 0.0
        %1082 = vmatpush1.xpose.msra.mxu0 0.0
        %1083 = vmatprep.subr.mxu0 0.0
        %1084 = vmatpush1.xpose.msra.mxu0 0.0
        %1085 = vmatprep.subr.mxu0 0.0
        %1086 = vmatpush1.xpose.msra.mxu0 0.0
        %1087 = vmatprep.subr.mxu0 0.0
        %1088 = vmatpush1.xpose.msra.mxu0 0.0
        %1089 = vmatprep.subr.mxu0 0.0
        %1090 = vmatpush1.xpose.msra.mxu0 0.0
        %1091 = vmatprep.subr.mxu0 0.0
        %1092 = vmatpush1.xpose.msra.mxu0 0.0
        %1093 = vmatprep.subr.mxu0 0.0
        %1094 = vmatpush1.xpose.msra.mxu0 0.0
        %1095 = vmatprep.subr.mxu0 0.0
        %1096 = vmatpush1.xpose.msra.mxu0 0.0
        %1097 = vmatprep.subr.mxu0 0.0
        %1098 = vmatpush1.xpose.msra.mxu0 0.0
        %1099 = vmatprep.subr.mxu0 0.0
        %1100 = vmatpush1.xpose.msra.mxu0 0.0
        %1101 = vmatprep.subr.mxu0 0.0
        %1102 = vmatpush1.xpose.msra.mxu0 0.0
        %1103 = vmatprep.subr.mxu0 0.0
        %1104 = vmatpush1.xpose.msra.mxu0 0.0
        %1105 = vmatprep.subr.mxu0 0.0
        %1106 = vmatpush1.xpose.msra.mxu0 0.0
        %1107 = vmatprep.subr.mxu0 0.0
        %1108 = vmatpush1.xpose.msra.mxu0 0.0
        %1109 = vmatprep.subr.mxu0 0.0
        %1110 = vmatpush1.xpose.msra.mxu0 0.0
        %1111 = vmatprep.subr.mxu0 0.0
        %1112 = vmatpush1.xpose.msra.mxu0 0.0
        %1113 = vmatprep.subr.mxu0 0.0
        %1114 = vmatpush1.xpose.msra.mxu0 0.0
        %1115 = vmatprep.subr.mxu0 0.0
        %1116 = vmatpush1.xpose.msra.mxu0 0.0
        %1117 = vmatprep.subr.mxu0 0.0
        %1118 = vmatpush1.xpose.msra.mxu0 0.0
        %1119 = vmatprep.subr.mxu0 0.0
        %1120 = vmatpush1.xpose.msra.mxu0 0.0
        %1121 = vmatprep.subr.mxu0 0.0
        %1122 = vmatpush1.xpose.msra.mxu0 0.0
        %1123 = vmatprep.subr.mxu0 0.0
        %1124 = vmatpush1.xpose.msra.mxu0 0.0
        %1125 = vmatprep.subr.mxu0 0.0
        %1126 = vmatpush1.xpose.msra.mxu0 0.0
        %1127 = vmatprep.subr.mxu0 0.0
        %1128 = vmatpush1.xpose.msra.mxu0 0.0
        %1129 = vmatprep.subr.mxu0 0.0
        %1130 = vmatpush1.xpose.msra.mxu0 0.0
        %1131 = vmatprep.subr.mxu0 0.0
        %1132 = vmatpush1.xpose.msra.mxu0 0.0
        %1133 = vmatprep.subr.mxu0 0.0
        %1134 = vmatpush1.xpose.msra.mxu0 0.0
        %1135 = vmatprep.subr.mxu0 0.0
        %1136 = vmatpush1.xpose.msra.mxu0 0.0
        %1137 = vmatprep.subr.mxu0 0.0
        %1138 = vmatpush1.xpose.msra.mxu0 0.0
        %1139 = vmatprep.mubr.f32.mxu0 0.0
        %1140 = vmatmul.mubr.f32.gmra.mrb[0].mxu0 %v284
        %v1141 = vpop.f32.mrb[0].mxu0
        %v1142 = vadd.f32 0.0, %v1141
        %v1143 = vpop.f32.mrb[0].mxu0
        %1144 = vdwg.mxu0
        %1145 = vmatprep.subr.mxu0 0.0
        %1146 = vmatpush1.xpose.msra.mxu0 %v301
        %1147 = vmatprep.subr.mxu0 0.0
        %1148 = vmatpush1.xpose.msra.mxu0 0.0
        %1149 = vmatprep.subr.mxu0 0.0
        %1150 = vmatpush1.xpose.msra.mxu0 0.0
        %1151 = vmatprep.subr.mxu0 0.0
        %1152 = vmatpush1.xpose.msra.mxu0 0.0
        %1153 = vmatprep.subr.mxu0 0.0
        %1154 = vmatpush1.xpose.msra.mxu0 0.0
        %1155 = vmatprep.subr.mxu0 0.0
        %1156 = vmatpush1.xpose.msra.mxu0 0.0
        %1157 = vmatprep.subr.mxu0 0.0
        %1158 = vmatpush1.xpose.msra.mxu0 0.0
        %1159 = vmatprep.subr.mxu0 0.0
        %1160 = vmatpush1.xpose.msra.mxu0 0.0
        %1161 = vmatprep.subr.mxu0 0.0
        %1162 = vmatpush1.xpose.msra.mxu0 0.0
        %1163 = vmatprep.subr.mxu0 0.0
        %1164 = vmatpush1.xpose.msra.mxu0 0.0
        %1165 = vmatprep.subr.mxu0 0.0
        %1166 = vmatpush1.xpose.msra.mxu0 0.0
        %1167 = vmatprep.subr.mxu0 0.0
        %1168 = vmatpush1.xpose.msra.mxu0 0.0
        %1169 = vmatprep.subr.mxu0 0.0
        %1170 = vmatpush1.xpose.msra.mxu0 0.0
        %1171 = vmatprep.subr.mxu0 0.0
        %1172 = vmatpush1.xpose.msra.mxu0 0.0
        %1173 = vmatprep.subr.mxu0 0.0
        %1174 = vmatpush1.xpose.msra.mxu0 0.0
        %1175 = vmatprep.subr.mxu0 0.0
        %1176 = vmatpush1.xpose.msra.mxu0 0.0
        %1177 = vmatprep.subr.mxu0 0.0
        %1178 = vmatpush1.xpose.msra.mxu0 0.0
        %1179 = vmatprep.subr.mxu0 0.0
        %1180 = vmatpush1.xpose.msra.mxu0 0.0
        %1181 = vmatprep.subr.mxu0 0.0
        %1182 = vmatpush1.xpose.msra.mxu0 0.0
        %1183 = vmatprep.subr.mxu0 0.0
        %1184 = vmatpush1.xpose.msra.mxu0 0.0
        %1185 = vmatprep.subr.mxu0 0.0
        %1186 = vmatpush1.xpose.msra.mxu0 0.0
        %1187 = vmatprep.subr.mxu0 0.0
        %1188 = vmatpush1.xpose.msra.mxu0 0.0
        %1189 = vmatprep.subr.mxu0 0.0
        %1190 = vmatpush1.xpose.msra.mxu0 0.0
        %1191 = vmatprep.subr.mxu0 0.0
        %1192 = vmatpush1.xpose.msra.mxu0 0.0
        %1193 = vmatprep.subr.mxu0 0.0
        %1194 = vmatpush1.xpose.msra.mxu0 0.0
        %1195 = vmatprep.subr.mxu0 0.0
        %1196 = vmatpush1.xpose.msra.mxu0 0.0
        %1197 = vmatprep.subr.mxu0 0.0
        %1198 = vmatpush1.xpose.msra.mxu0 0.0
        %1199 = vmatprep.subr.mxu0 0.0
        %1200 = vmatpush1.xpose.msra.mxu0 0.0
        %1201 = vmatprep.subr.mxu0 0.0
        %1202 = vmatpush1.xpose.msra.mxu0 0.0
        %1203 = vmatprep.subr.mxu0 0.0
        %1204 = vmatpush1.xpose.msra.mxu0 0.0
        %1205 = vmatprep.subr.mxu0 0.0
        %1206 = vmatpush1.xpose.msra.mxu0 0.0
        %1207 = vmatprep.subr.mxu0 0.0
        %1208 = vmatpush1.xpose.msra.mxu0 0.0
        %1209 = vmatprep.mubr.f32.mxu0 0.0
        %1210 = vmatmul.mubr.f32.gmra.mrb[0].mxu0 %v285
        %v1211 = vpop.f32.mrb[0].mxu0
        %v1212 = vadd.f32 0.0, %v1211
        %v1213 = vpop.f32.mrb[0].mxu0
        %1214 = vdwg.mxu0
        %1215 = vmatprep.subr.mxu0 0.0
        %1216 = vmatpush1.xpose.msra.mxu0 %v302
        %1217 = vmatprep.subr.mxu0 0.0
        %1218 = vmatpush1.xpose.msra.mxu0 0.0
        %1219 = vmatprep.subr.mxu0 0.0
        %1220 = vmatpush1.xpose.msra.mxu0 0.0
        %1221 = vmatprep.subr.mxu0 0.0
        %1222 = vmatpush1.xpose.msra.mxu0 0.0
        %1223 = vmatprep.subr.mxu0 0.0
        %1224 = vmatpush1.xpose.msra.mxu0 0.0
        %1225 = vmatprep.subr.mxu0 0.0
        %1226 = vmatpush1.xpose.msra.mxu0 0.0
        %1227 = vmatprep.subr.mxu0 0.0
        %1228 = vmatpush1.xpose.msra.mxu0 0.0
        %1229 = vmatprep.subr.mxu0 0.0
        %1230 = vmatpush1.xpose.msra.mxu0 0.0
        %1231 = vmatprep.subr.mxu0 0.0
        %1232 = vmatpush1.xpose.msra.mxu0 0.0
        %1233 = vmatprep.subr.mxu0 0.0
        %1234 = vmatpush1.xpose.msra.mxu0 0.0
        %1235 = vmatprep.subr.mxu0 0.0
        %1236 = vmatpush1.xpose.msra.mxu0 0.0
        %1237 = vmatprep.subr.mxu0 0.0
        %1238 = vmatpush1.xpose.msra.mxu0 0.0
        %1239 = vmatprep.subr.mxu0 0.0
        %1240 = vmatpush1.xpose.msra.mxu0 0.0
        %1241 = vmatprep.subr.mxu0 0.0
        %1242 = vmatpush1.xpose.msra.mxu0 0.0
        %1243 = vmatprep.subr.mxu0 0.0
        %1244 = vmatpush1.xpose.msra.mxu0 0.0
        %1245 = vmatprep.subr.mxu0 0.0
        %1246 = vmatpush1.xpose.msra.mxu0 0.0
        %1247 = vmatprep.subr.mxu0 0.0
        %1248 = vmatpush1.xpose.msra.mxu0 0.0
        %1249 = vmatprep.subr.mxu0 0.0
        %1250 = vmatpush1.xpose.msra.mxu0 0.0
        %1251 = vmatprep.subr.mxu0 0.0
        %1252 = vmatpush1.xpose.msra.mxu0 0.0
        %1253 = vmatprep.subr.mxu0 0.0
        %1254 = vmatpush1.xpose.msra.mxu0 0.0
        %1255 = vmatprep.subr.mxu0 0.0
        %1256 = vmatpush1.xpose.msra.mxu0 0.0
        %1257 = vmatprep.subr.mxu0 0.0
        %1258 = vmatpush1.xpose.msra.mxu0 0.0
        %1259 = vmatprep.subr.mxu0 0.0
        %1260 = vmatpush1.xpose.msra.mxu0 0.0
        %1261 = vmatprep.subr.mxu0 0.0
        %1262 = vmatpush1.xpose.msra.mxu0 0.0
        %1263 = vmatprep.subr.mxu0 0.0
        %1264 = vmatpush1.xpose.msra.mxu0 0.0
        %1265 = vmatprep.subr.mxu0 0.0
        %1266 = vmatpush1.xpose.msra.mxu0 0.0
        %1267 = vmatprep.subr.mxu0 0.0
        %1268 = vmatpush1.xpose.msra.mxu0 0.0
        %1269 = vmatprep.subr.mxu0 0.0
        %1270 = vmatpush1.xpose.msra.mxu0 0.0
        %1271 = vmatprep.subr.mxu0 0.0
        %1272 = vmatpush1.xpose.msra.mxu0 0.0
        %1273 = vmatprep.subr.mxu0 0.0
        %1274 = vmatpush1.xpose.msra.mxu0 0.0
        %1275 = vmatprep.subr.mxu0 0.0
        %1276 = vmatpush1.xpose.msra.mxu0 0.0
        %1277 = vmatprep.subr.mxu0 0.0
        %1278 = vmatpush1.xpose.msra.mxu0 0.0
        %1279 = vmatprep.mubr.f32.mxu0 0.0
        %1280 = vmatmul.mubr.f32.gmra.mrb[0].mxu0 %v286
        %v1281 = vpop.f32.mrb[0].mxu0
        %v1282 = vadd.f32 0.0, %v1281
        %v1283 = vpop.f32.mrb[0].mxu0
        %1284 = vdwg.mxu0
        %1285 = vmatprep.subr.mxu0 0.0
        %1286 = vmatpush1.xpose.msra.mxu0 %v303
        %1287 = vmatprep.subr.mxu0 0.0
        %1288 = vmatpush1.xpose.msra.mxu0 0.0
        %1289 = vmatprep.subr.mxu0 0.0
        %1290 = vmatpush1.xpose.msra.mxu0 0.0
        %1291 = vmatprep.subr.mxu0 0.0
        %1292 = vmatpush1.xpose.msra.mxu0 0.0
        %1293 = vmatprep.subr.mxu0 0.0
        %1294 = vmatpush1.xpose.msra.mxu0 0.0
        %1295 = vmatprep.subr.mxu0 0.0
        %1296 = vmatpush1.xpose.msra.mxu0 0.0
        %1297 = vmatprep.subr.mxu0 0.0
        %1298 = vmatpush1.xpose.msra.mxu0 0.0
        %1299 = vmatprep.subr.mxu0 0.0
        %1300 = vmatpush1.xpose.msra.mxu0 0.0
        %1301 = vmatprep.subr.mxu0 0.0
        %1302 = vmatpush1.xpose.msra.mxu0 0.0
        %1303 = vmatprep.subr.mxu0 0.0
        %1304 = vmatpush1.xpose.msra.mxu0 0.0
        %1305 = vmatprep.subr.mxu0 0.0
        %1306 = vmatpush1.xpose.msra.mxu0 0.0
        %1307 = vmatprep.subr.mxu0 0.0
        %1308 = vmatpush1.xpose.msra.mxu0 0.0
        %1309 = vmatprep.subr.mxu0 0.0
        %1310 = vmatpush1.xpose.msra.mxu0 0.0
        %1311 = vmatprep.subr.mxu0 0.0
        %1312 = vmatpush1.xpose.msra.mxu0 0.0
        %1313 = vmatprep.subr.mxu0 0.0
        %1314 = vmatpush1.xpose.msra.mxu0 0.0
        %1315 = vmatprep.subr.mxu0 0.0
        %1316 = vmatpush1.xpose.msra.mxu0 0.0
        %1317 = vmatprep.subr.mxu0 0.0
        %1318 = vmatpush1.xpose.msra.mxu0 0.0
        %1319 = vmatprep.subr.mxu0 0.0
        %1320 = vmatpush1.xpose.msra.mxu0 0.0
        %1321 = vmatprep.subr.mxu0 0.0
        %1322 = vmatpush1.xpose.msra.mxu0 0.0
        %1323 = vmatprep.subr.mxu0 0.0
        %1324 = vmatpush1.xpose.msra.mxu0 0.0
        %1325 = vmatprep.subr.mxu0 0.0
        %1326 = vmatpush1.xpose.msra.mxu0 0.0
        %1327 = vmatprep.subr.mxu0 0.0
        %1328 = vmatpush1.xpose.msra.mxu0 0.0
        %1329 = vmatprep.subr.mxu0 0.0
        %1330 = vmatpush1.xpose.msra.mxu0 0.0
        %1331 = vmatprep.subr.mxu0 0.0
        %1332 = vmatpush1.xpose.msra.mxu0 0.0
        %1333 = vmatprep.subr.mxu0 0.0
        %1334 = vmatpush1.xpose.msra.mxu0 0.0
        %1335 = vmatprep.subr.mxu0 0.0
        %1336 = vmatpush1.xpose.msra.mxu0 0.0
        %1337 = vmatprep.subr.mxu0 0.0
        %1338 = vmatpush1.xpose.msra.mxu0 0.0
        %1339 = vmatprep.subr.mxu0 0.0
        %1340 = vmatpush1.xpose.msra.mxu0 0.0
        %1341 = vmatprep.subr.mxu0 0.0
        %1342 = vmatpush1.xpose.msra.mxu0 0.0
        %1343 = vmatprep.subr.mxu0 0.0
        %1344 = vmatpush1.xpose.msra.mxu0 0.0
        %1345 = vmatprep.subr.mxu0 0.0
        %1346 = vmatpush1.xpose.msra.mxu0 0.0
        %1347 = vmatprep.subr.mxu0 0.0
        %1348 = vmatpush1.xpose.msra.mxu0 0.0
        %1349 = vmatprep.mubr.f32.mxu0 0.0
        %1350 = vmatmul.mubr.f32.gmra.mrb[0].mxu0 %v287
        %v1351 = vpop.f32.mrb[0].mxu0
        %v1352 = vadd.f32 0.0, %v1351
        %v1353 = vpop.f32.mrb[0].mxu0
        %1354 = vdwg.mxu0
        %1355 = vmatprep.subr.mxu0 0.0
        %1356 = vmatpush1.xpose.msra.mxu0 %v304
        %1357 = vmatprep.subr.mxu0 0.0
        %1358 = vmatpush1.xpose.msra.mxu0 0.0
        %1359 = vmatprep.subr.mxu0 0.0
        %1360 = vmatpush1.xpose.msra.mxu0 0.0
        %1361 = vmatprep.subr.mxu0 0.0
        %1362 = vmatpush1.xpose.msra.mxu0 0.0
        %1363 = vmatprep.subr.mxu0 0.0
        %1364 = vmatpush1.xpose.msra.mxu0 0.0
        %1365 = vmatprep.subr.mxu0 0.0
        %1366 = vmatpush1.xpose.msra.mxu0 0.0
        %1367 = vmatprep.subr.mxu0 0.0
        %1368 = vmatpush1.xpose.msra.mxu0 0.0
        %1369 = vmatprep.subr.mxu0 0.0
        %1370 = vmatpush1.xpose.msra.mxu0 0.0
        %1371 = vmatprep.subr.mxu0 0.0
        %1372 = vmatpush1.xpose.msra.mxu0 0.0
        %1373 = vmatprep.subr.mxu0 0.0
        %1374 = vmatpush1.xpose.msra.mxu0 0.0
        %1375 = vmatprep.subr.mxu0 0.0
        %1376 = vmatpush1.xpose.msra.mxu0 0.0
        %1377 = vmatprep.subr.mxu0 0.0
        %1378 = vmatpush1.xpose.msra.mxu0 0.0
        %1379 = vmatprep.subr.mxu0 0.0
        %1380 = vmatpush1.xpose.msra.mxu0 0.0
        %1381 = vmatprep.subr.mxu0 0.0
        %1382 = vmatpush1.xpose.msra.mxu0 0.0
        %1383 = vmatprep.subr.mxu0 0.0
        %1384 = vmatpush1.xpose.msra.mxu0 0.0
        %1385 = vmatprep.subr.mxu0 0.0
        %1386 = vmatpush1.xpose.msra.mxu0 0.0
        %1387 = vmatprep.subr.mxu0 0.0
        %1388 = vmatpush1.xpose.msra.mxu0 0.0
        %1389 = vmatprep.subr.mxu0 0.0
        %1390 = vmatpush1.xpose.msra.mxu0 0.0
        %1391 = vmatprep.subr.mxu0 0.0
        %1392 = vmatpush1.xpose.msra.mxu0 0.0
        %1393 = vmatprep.subr.mxu0 0.0
        %1394 = vmatpush1.xpose.msra.mxu0 0.0
        %1395 = vmatprep.subr.mxu0 0.0
        %1396 = vmatpush1.xpose.msra.mxu0 0.0
        %1397 = vmatprep.subr.mxu0 0.0
        %1398 = vmatpush1.xpose.msra.mxu0 0.0
        %1399 = vmatprep.subr.mxu0 0.0
        %1400 = vmatpush1.xpose.msra.mxu0 0.0
        %1401 = vmatprep.subr.mxu0 0.0
        %1402 = vmatpush1.xpose.msra.mxu0 0.0
        %1403 = vmatprep.subr.mxu0 0.0
        %1404 = vmatpush1.xpose.msra.mxu0 0.0
        %1405 = vmatprep.subr.mxu0 0.0
        %1406 = vmatpush1.xpose.msra.mxu0 0.0
        %1407 = vmatprep.subr.mxu0 0.0
        %1408 = vmatpush1.xpose.msra.mxu0 0.0
        %1409 = vmatprep.subr.mxu0 0.0
        %1410 = vmatpush1.xpose.msra.mxu0 0.0
        %1411 = vmatprep.subr.mxu0 0.0
        %1412 = vmatpush1.xpose.msra.mxu0 0.0
        %1413 = vmatprep.subr.mxu0 0.0
        %1414 = vmatpush1.xpose.msra.mxu0 0.0
        %1415 = vmatprep.subr.mxu0 0.0
        %1416 = vmatpush1.xpose.msra.mxu0 0.0
        %1417 = vmatprep.subr.mxu0 0.0
        %1418 = vmatpush1.xpose.msra.mxu0 0.0
        %1419 = vmatprep.mubr.f32.mxu0 0.0
        %1420 = vmatmul.mubr.f32.gmra.mrb[0].mxu0 %v288
        %v1421 = vpop.f32.mrb[0].mxu0
        %v1422 = vadd.f32 0.0, %v1421
        %v1423 = vpop.f32.mrb[0].mxu0
        %1424 = vdwg.mxu0
        %vm1425 = vcmask 57344
        %v1426 = vsel %vm1425, %v372, -inf
        %1427 = vmax.xlane.f32.xlu0 %v1426
        %v1428 = vpop.xlane.xlu0 %1427
        %v1429 = vsel %vm1425, %v442, -inf
        %1430 = vmax.xlane.f32.xlu0 %v1429
        %v1431 = vpop.xlane.xlu0 %1430
        %v1432 = vsel %vm1425, %v512, -inf
        %1433 = vmax.xlane.f32.xlu0 %v1432
        %v1434 = vpop.xlane.xlu0 %1433
        %v1435 = vsel %vm1425, %v582, -inf
        %1436 = vmax.xlane.f32.xlu0 %v1435
        %v1437 = vpop.xlane.xlu0 %1436
        %v1438 = vsel %vm1425, %v652, -inf
        %1439 = vmax.xlane.f32.xlu0 %v1438
        %v1440 = vpop.xlane.xlu0 %1439
        %v1441 = vsel %vm1425, %v722, -inf
        %1442 = vmax.xlane.f32.xlu0 %v1441
        %v1443 = vpop.xlane.xlu0 %1442
        %v1444 = vsel %vm1425, %v792, -inf
        %1445 = vmax.xlane.f32.xlu0 %v1444
        %v1446 = vpop.xlane.xlu0 %1445
        %v1447 = vsel %vm1425, %v862, -inf
        %1448 = vmax.xlane.f32.xlu0 %v1447
        %v1449 = vpop.xlane.xlu0 %1448
        %v1450 = vsel %vm1425, %v932, -inf
        %1451 = vmax.xlane.f32.xlu0 %v1450
        %v1452 = vpop.xlane.xlu0 %1451
        %v1453 = vsel %vm1425, %v1002, -inf
        %1454 = vmax.xlane.f32.xlu0 %v1453
        %v1455 = vpop.xlane.xlu0 %1454
        %v1456 = vsel %vm1425, %v1072, -inf
        %1457 = vmax.xlane.f32.xlu0 %v1456
        %v1458 = vpop.xlane.xlu0 %1457
        %v1459 = vsel %vm1425, %v1142, -inf
        %1460 = vmax.xlane.f32.xlu0 %v1459
        %v1461 = vpop.xlane.xlu0 %1460
        %v1462 = vsel %vm1425, %v1212, -inf
        %1463 = vmax.xlane.f32.xlu0 %v1462
        %v1464 = vpop.xlane.xlu0 %1463
        %v1465 = vsel %vm1425, %v1282, -inf
        %1466 = vmax.xlane.f32.xlu0 %v1465
        %v1467 = vpop.xlane.xlu0 %1466
        %v1468 = vsel %vm1425, %v1352, -inf
        %1469 = vmax.xlane.f32.xlu0 %v1468
        %v1470 = vpop.xlane.xlu0 %1469
        %v1471 = vsel %vm1425, %v1422, -inf
        %1472 = vmax.xlane.f32.xlu0 %v1471
        %v1473 = vpop.xlane.xlu0 %1472
        %v1474 = vsub.f32 %v372, %v1428
        %v1475 = vsub.f32 %v442, %v1431
        %v1476 = vsub.f32 %v512, %v1434
        %v1477 = vsub.f32 %v582, %v1437
        %v1478 = vsub.f32 %v652, %v1440
        %v1479 = vsub.f32 %v722, %v1443
        %v1480 = vsub.f32 %v792, %v1446
        %v1481 = vsub.f32 %v862, %v1449
        %v1482 = vsub.f32 %v932, %v1452
        %v1483 = vsub.f32 %v1002, %v1455
        %v1484 = vsub.f32 %v1072, %v1458
        %v1485 = vsub.f32 %v1142, %v1461
        %v1486 = vsub.f32 %v1212, %v1464
        %v1487 = vsub.f32 %v1282, %v1467
        %v1488 = vsub.f32 %v1352, %v1470
        %v1489 = vsub.f32 %v1422, %v1473
        %v1490 = vmul.f32 %v1474, 1.442695
        %v1491 = vpow.pop %v1490
        %v1492 = vmul.f32 %v1475, 1.442695
        %v1493 = vpow.pop %v1492
        %v1494 = vmul.f32 %v1476, 1.442695
        %v1495 = vpow.pop %v1494
        %v1496 = vmul.f32 %v1477, 1.442695
        %v1497 = vpow.pop %v1496
        %v1498 = vmul.f32 %v1478, 1.442695
        %v1499 = vpow.pop %v1498
        %v1500 = vmul.f32 %v1479, 1.442695
        %v1501 = vpow.pop %v1500
        %v1502 = vmul.f32 %v1480, 1.442695
        %v1503 = vpow.pop %v1502
        %v1504 = vmul.f32 %v1481, 1.442695
        %v1505 = vpow.pop %v1504
        %v1506 = vmul.f32 %v1482, 1.442695
        %v1507 = vpow.pop %v1506
        %v1508 = vmul.f32 %v1483, 1.442695
        %v1509 = vpow.pop %v1508
        %v1510 = vmul.f32 %v1484, 1.442695
        %v1511 = vpow.pop %v1510
        %v1512 = vmul.f32 %v1485, 1.442695
        %v1513 = vpow.pop %v1512
        %v1514 = vmul.f32 %v1486, 1.442695
        %v1515 = vpow.pop %v1514
        %v1516 = vmul.f32 %v1487, 1.442695
        %v1517 = vpow.pop %v1516
        %v1518 = vmul.f32 %v1488, 1.442695
        %v1519 = vpow.pop %v1518
        %v1520 = vmul.f32 %v1489, 1.442695
        %v1521 = vpow.pop %v1520
        %v1522 = vsel %vm1425, %v1491, 0.0
        %1523 = vadd.xlane.f32.xlu0 %v1522
        %v1524 = vpop.xlane.xlu0 %1523
        %v1525 = vsel %vm1425, %v1493, 0.0
        %1526 = vadd.xlane.f32.xlu0 %v1525
        %v1527 = vpop.xlane.xlu0 %1526
        %v1528 = vsel %vm1425, %v1495, 0.0
        %1529 = vadd.xlane.f32.xlu0 %v1528
        %v1530 = vpop.xlane.xlu0 %1529
        %v1531 = vsel %vm1425, %v1497, 0.0
        %1532 = vadd.xlane.f32.xlu0 %v1531
        %v1533 = vpop.xlane.xlu0 %1532
        %v1534 = vsel %vm1425, %v1499, 0.0
        %1535 = vadd.xlane.f32.xlu0 %v1534
        %v1536 = vpop.xlane.xlu0 %1535
        %v1537 = vsel %vm1425, %v1501, 0.0
        %1538 = vadd.xlane.f32.xlu0 %v1537
        %v1539 = vpop.xlane.xlu0 %1538
        %v1540 = vsel %vm1425, %v1503, 0.0
        %1541 = vadd.xlane.f32.xlu0 %v1540
        %v1542 = vpop.xlane.xlu0 %1541
        %v1543 = vsel %vm1425, %v1505, 0.0
        %1544 = vadd.xlane.f32.xlu0 %v1543
        %v1545 = vpop.xlane.xlu0 %1544
        %v1546 = vsel %vm1425, %v1507, 0.0
        %1547 = vadd.xlane.f32.xlu0 %v1546
        %v1548 = vpop.xlane.xlu0 %1547
        %v1549 = vsel %vm1425, %v1509, 0.0
        %1550 = vadd.xlane.f32.xlu0 %v1549
        %v1551 = vpop.xlane.xlu0 %1550
        %v1552 = vsel %vm1425, %v1511, 0.0
        %1553 = vadd.xlane.f32.xlu0 %v1552
        %v1554 = vpop.xlane.xlu0 %1553
        %v1555 = vsel %vm1425, %v1513, 0.0
        %1556 = vadd.xlane.f32.xlu0 %v1555
        %v1557 = vpop.xlane.xlu0 %1556
        %v1558 = vsel %vm1425, %v1515, 0.0
        %1559 = vadd.xlane.f32.xlu0 %v1558
        %v1560 = vpop.xlane.xlu0 %1559
        %v1561 = vsel %vm1425, %v1517, 0.0
        %1562 = vadd.xlane.f32.xlu0 %v1561
        %v1563 = vpop.xlane.xlu0 %1562
        %v1564 = vsel %vm1425, %v1519, 0.0
        %1565 = vadd.xlane.f32.xlu0 %v1564
        %v1566 = vpop.xlane.xlu0 %1565
        %v1567 = vsel %vm1425, %v1521, 0.0
        %1568 = vadd.xlane.f32.xlu0 %v1567
        %v1569 = vpop.xlane.xlu0 %1568
        %v1570 = vrcp.pop %v1524
        %v1571 = vrcp.pop %v1527
        %v1572 = vrcp.pop %v1530
        %v1573 = vrcp.pop %v1533
        %v1574 = vrcp.pop %v1536
        %v1575 = vrcp.pop %v1539
        %v1576 = vrcp.pop %v1542
        %v1577 = vrcp.pop %v1545
        %v1578 = vrcp.pop %v1548
        %v1579 = vrcp.pop %v1551
        %v1580 = vrcp.pop %v1554
        %v1581 = vrcp.pop %v1557
        %v1582 = vrcp.pop %v1560
        %v1583 = vrcp.pop %v1563
        %v1584 = vrcp.pop %v1566
        %v1585 = vrcp.pop %v1569
        %v1586 = vmul.f32 %v1491, %v1570
        %v1587 = vmul.f32 %v1493, %v1571
        %v1588 = vmul.f32 %v1495, %v1572
        %v1589 = vmul.f32 %v1497, %v1573
        %v1590 = vmul.f32 %v1499, %v1574
        %v1591 = vmul.f32 %v1501, %v1575
        %v1592 = vmul.f32 %v1503, %v1576
        %v1593 = vmul.f32 %v1505, %v1577
        %v1594 = vmul.f32 %v1507, %v1578
        %v1595 = vmul.f32 %v1509, %v1579
        %v1596 = vmul.f32 %v1511, %v1580
        %v1597 = vmul.f32 %v1513, %v1581
        %v1598 = vmul.f32 %v1515, %v1582
        %v1599 = vmul.f32 %v1517, %v1583
        %v1600 = vmul.f32 %v1519, %v1584
        %v1601 = vmul.f32 %v1521, %v1585
        %vm1602 = vcmask 64512
        %v1604 = vsel %vm1602, %v1586, 0
        %1606 = vmatprep.subr.mxu0 0.0
        %1607 = vmatpush1.msra.mxu0 %v289
        %1608 = vmatprep.subr.mxu0 0.0
        %1609 = vmatpush1.msra.mxu0 0.0
        %1610 = vmatprep.subr.mxu0 0.0
        %1611 = vmatpush1.msra.mxu0 0.0
        %1612 = vmatprep.subr.mxu0 0.0
        %1613 = vmatpush1.msra.mxu0 0.0
        %1614 = vmatprep.subr.mxu0 0.0
        %1615 = vmatpush1.msra.mxu0 0.0
        %1616 = vmatprep.subr.mxu0 0.0
        %1617 = vmatpush1.msra.mxu0 0.0
        %1618 = vmatprep.subr.mxu0 0.0
        %1619 = vmatpush1.msra.mxu0 0.0
        %1620 = vmatprep.subr.mxu0 0.0
        %1621 = vmatpush1.msra.mxu0 0.0
        %1622 = vmatprep.subr.mxu0 0.0
        %1623 = vmatpush1.msra.mxu0 0.0
        %1624 = vmatprep.subr.mxu0 0.0
        %1625 = vmatpush1.msra.mxu0 0.0
        %1626 = vmatprep.subr.mxu0 0.0
        %1627 = vmatpush1.msra.mxu0 0.0
        %1628 = vmatprep.subr.mxu0 0.0
        %1629 = vmatpush1.msra.mxu0 0.0
        %1630 = vmatprep.subr.mxu0 0.0
        %1631 = vmatpush1.msra.mxu0 0.0
        %1632 = vmatprep.subr.mxu0 0.0
        %1633 = vmatpush1.msra.mxu0 0.0
        %1634 = vmatprep.subr.mxu0 0.0
        %1635 = vmatpush1.msra.mxu0 0.0
        %1636 = vmatprep.subr.mxu0 0.0
        %1637 = vmatpush1.msra.mxu0 0.0
        %1638 = vmatprep.subr.mxu0 0.0
        %1639 = vmatpush1.msra.mxu0 0.0
        %1640 = vmatprep.subr.mxu0 0.0
        %1641 = vmatpush1.msra.mxu0 0.0
        %1642 = vmatprep.subr.mxu0 0.0
        %1643 = vmatpush1.msra.mxu0 0.0
        %1644 = vmatprep.subr.mxu0 0.0
        %1645 = vmatpush1.msra.mxu0 0.0
        %1646 = vmatprep.subr.mxu0 0.0
        %1647 = vmatpush1.msra.mxu0 0.0
        %1648 = vmatprep.subr.mxu0 0.0
        %1649 = vmatpush1.msra.mxu0 0.0
        %1650 = vmatprep.subr.mxu0 0.0
        %1651 = vmatpush1.msra.mxu0 0.0
        %1652 = vmatprep.subr.mxu0 0.0
        %1653 = vmatpush1.msra.mxu0 0.0
        %1654 = vmatprep.subr.mxu0 0.0
        %1655 = vmatpush1.msra.mxu0 0.0
        %1656 = vmatprep.subr.mxu0 0.0
        %1657 = vmatpush1.msra.mxu0 0.0
        %1658 = vmatprep.subr.mxu0 0.0
        %1659 = vmatpush1.msra.mxu0 0.0
        %1660 = vmatprep.subr.mxu0 0.0
        %1661 = vmatpush1.msra.mxu0 0.0
        %1662 = vmatprep.subr.mxu0 0.0
        %1663 = vmatpush1.msra.mxu0 0.0
        %1664 = vmatprep.subr.mxu0 0.0
        %1665 = vmatpush1.msra.mxu0 0.0
        %1666 = vmatprep.subr.mxu0 0.0
        %1667 = vmatpush1.msra.mxu0 0.0
        %1668 = vmatprep.subr.mxu0 0.0
        %1669 = vmatpush1.msra.mxu0 0.0
        %1670 = vmatprep.mubr.f32.mxu0 0.0
        %1671 = vmatmul.mubr.f32.gmra.mrb[0].mxu0 %v1604
        %v1672 = vpop.f32.mrb[0].mxu0
        %v1673 = vadd.f32 0.0, %v1672
        %v1674 = vpop.f32.mrb[0].mxu0
        %1675 = vdwg.mxu0
        %v1677 = vsel %vm1602, %v1587, 0
        %1679 = vmatprep.subr.mxu0 0.0
        %1680 = vmatpush1.msra.mxu0 %v290
        %1681 = vmatprep.subr.mxu0 0.0
        %1682 = vmatpush1.msra.mxu0 0.0
        %1683 = vmatprep.subr.mxu0 0.0
        %1684 = vmatpush1.msra.mxu0 0.0
        %1685 = vmatprep.subr.mxu0 0.0
        %1686 = vmatpush1.msra.mxu0 0.0
        %1687 = vmatprep.subr.mxu0 0.0
        %1688 = vmatpush1.msra.mxu0 0.0
        %1689 = vmatprep.subr.mxu0 0.0
        %1690 = vmatpush1.msra.mxu0 0.0
        %1691 = vmatprep.subr.mxu0 0.0
        %1692 = vmatpush1.msra.mxu0 0.0
        %1693 = vmatprep.subr.mxu0 0.0
        %1694 = vmatpush1.msra.mxu0 0.0
        %1695 = vmatprep.subr.mxu0 0.0
        %1696 = vmatpush1.msra.mxu0 0.0
        %1697 = vmatprep.subr.mxu0 0.0
        %1698 = vmatpush1.msra.mxu0 0.0
        %1699 = vmatprep.subr.mxu0 0.0
        %1700 = vmatpush1.msra.mxu0 0.0
        %1701 = vmatprep.subr.mxu0 0.0
        %1702 = vmatpush1.msra.mxu0 0.0
        %1703 = vmatprep.subr.mxu0 0.0
        %1704 = vmatpush1.msra.mxu0 0.0
        %1705 = vmatprep.subr.mxu0 0.0
        %1706 = vmatpush1.msra.mxu0 0.0
        %1707 = vmatprep.subr.mxu0 0.0
        %1708 = vmatpush1.msra.mxu0 0.0
        %1709 = vmatprep.subr.mxu0 0.0
        %1710 = vmatpush1.msra.mxu0 0.0
        %1711 = vmatprep.subr.mxu0 0.0
        %1712 = vmatpush1.msra.mxu0 0.0
        %1713 = vmatprep.subr.mxu0 0.0
        %1714 = vmatpush1.msra.mxu0 0.0
        %1715 = vmatprep.subr.mxu0 0.0
        %1716 = vmatpush1.msra.mxu0 0.0
        %1717 = vmatprep.subr.mxu0 0.0
        %1718 = vmatpush1.msra.mxu0 0.0
        %1719 = vmatprep.subr.mxu0 0.0
        %1720 = vmatpush1.msra.mxu0 0.0
        %1721 = vmatprep.subr.mxu0 0.0
        %1722 = vmatpush1.msra.mxu0 0.0
        %1723 = vmatprep.subr.mxu0 0.0
        %1724 = vmatpush1.msra.mxu0 0.0
        %1725 = vmatprep.subr.mxu0 0.0
        %1726 = vmatpush1.msra.mxu0 0.0
        %1727 = vmatprep.subr.mxu0 0.0
        %1728 = vmatpush1.msra.mxu0 0.0
        %1729 = vmatprep.subr.mxu0 0.0
        %1730 = vmatpush1.msra.mxu0 0.0
        %1731 = vmatprep.subr.mxu0 0.0
        %1732 = vmatpush1.msra.mxu0 0.0
        %1733 = vmatprep.subr.mxu0 0.0
        %1734 = vmatpush1.msra.mxu0 0.0
        %1735 = vmatprep.subr.mxu0 0.0
        %1736 = vmatpush1.msra.mxu0 0.0
        %1737 = vmatprep.subr.mxu0 0.0
        %1738 = vmatpush1.msra.mxu0 0.0
        %1739 = vmatprep.subr.mxu0 0.0
        %1740 = vmatpush1.msra.mxu0 0.0
        %1741 = vmatprep.subr.mxu0 0.0
        %1742 = vmatpush1.msra.mxu0 0.0
        %1743 = vmatprep.mubr.f32.mxu0 0.0
        %1744 = vmatmul.mubr.f32.gmra.mrb[0].mxu0 %v1677
        %v1745 = vpop.f32.mrb[0].mxu0
        %v1746 = vadd.f32 0.0, %v1745
        %v1747 = vpop.f32.mrb[0].mxu0
        %1748 = vdwg.mxu0
        %v1750 = vsel %vm1602, %v1588, 0
        %1752 = vmatprep.subr.mxu0 0.0
        %1753 = vmatpush1.msra.mxu0 %v291
        %1754 = vmatprep.subr.mxu0 0.0
        %1755 = vmatpush1.msra.mxu0 0.0
        %1756 = vmatprep.subr.mxu0 0.0
        %1757 = vmatpush1.msra.mxu0 0.0
        %1758 = vmatprep.subr.mxu0 0.0
        %1759 = vmatpush1.msra.mxu0 0.0
        %1760 = vmatprep.subr.mxu0 0.0
        %1761 = vmatpush1.msra.mxu0 0.0
        %1762 = vmatprep.subr.mxu0 0.0
        %1763 = vmatpush1.msra.mxu0 0.0
        %1764 = vmatprep.subr.mxu0 0.0
        %1765 = vmatpush1.msra.mxu0 0.0
        %1766 = vmatprep.subr.mxu0 0.0
        %1767 = vmatpush1.msra.mxu0 0.0
        %1768 = vmatprep.subr.mxu0 0.0
        %1769 = vmatpush1.msra.mxu0 0.0
        %1770 = vmatprep.subr.mxu0 0.0
        %1771 = vmatpush1.msra.mxu0 0.0
        %1772 = vmatprep.subr.mxu0 0.0
        %1773 = vmatpush1.msra.mxu0 0.0
        %1774 = vmatprep.subr.mxu0 0.0
        %1775 = vmatpush1.msra.mxu0 0.0
        %1776 = vmatprep.subr.mxu0 0.0
        %1777 = vmatpush1.msra.mxu0 0.0
        %1778 = vmatprep.subr.mxu0 0.0
        %1779 = vmatpush1.msra.mxu0 0.0
        %1780 = vmatprep.subr.mxu0 0.0
        %1781 = vmatpush1.msra.mxu0 0.0
        %1782 = vmatprep.subr.mxu0 0.0
        %1783 = vmatpush1.msra.mxu0 0.0
        %1784 = vmatprep.subr.mxu0 0.0
        %1785 = vmatpush1.msra.mxu0 0.0
        %1786 = vmatprep.subr.mxu0 0.0
        %1787 = vmatpush1.msra.mxu0 0.0
        %1788 = vmatprep.subr.mxu0 0.0
        %1789 = vmatpush1.msra.mxu0 0.0
        %1790 = vmatprep.subr.mxu0 0.0
        %1791 = vmatpush1.msra.mxu0 0.0
        %1792 = vmatprep.subr.mxu0 0.0
        %1793 = vmatpush1.msra.mxu0 0.0
        %1794 = vmatprep.subr.mxu0 0.0
        %1795 = vmatpush1.msra.mxu0 0.0
        %1796 = vmatprep.subr.mxu0 0.0
        %1797 = vmatpush1.msra.mxu0 0.0
        %1798 = vmatprep.subr.mxu0 0.0
        %1799 = vmatpush1.msra.mxu0 0.0
        %1800 = vmatprep.subr.mxu0 0.0
        %1801 = vmatpush1.msra.mxu0 0.0
        %1802 = vmatprep.subr.mxu0 0.0
        %1803 = vmatpush1.msra.mxu0 0.0
        %1804 = vmatprep.subr.mxu0 0.0
        %1805 = vmatpush1.msra.mxu0 0.0
        %1806 = vmatprep.subr.mxu0 0.0
        %1807 = vmatpush1.msra.mxu0 0.0
        %1808 = vmatprep.subr.mxu0 0.0
        %1809 = vmatpush1.msra.mxu0 0.0
        %1810 = vmatprep.subr.mxu0 0.0
        %1811 = vmatpush1.msra.mxu0 0.0
        %1812 = vmatprep.subr.mxu0 0.0
        %1813 = vmatpush1.msra.mxu0 0.0
        %1814 = vmatprep.subr.mxu0 0.0
        %1815 = vmatpush1.msra.mxu0 0.0
        %1816 = vmatprep.mubr.f32.mxu0 0.0
        %1817 = vmatmul.mubr.f32.gmra.mrb[0].mxu0 %v1750
        %v1818 = vpop.f32.mrb[0].mxu0
        %v1819 = vadd.f32 0.0, %v1818
        %v1820 = vpop.f32.mrb[0].mxu0
        %1821 = vdwg.mxu0
        %v1823 = vsel %vm1602, %v1589, 0
        %1825 = vmatprep.subr.mxu0 0.0
        %1826 = vmatpush1.msra.mxu0 %v292
        %1827 = vmatprep.subr.mxu0 0.0
        %1828 = vmatpush1.msra.mxu0 0.0
        %1829 = vmatprep.subr.mxu0 0.0
        %1830 = vmatpush1.msra.mxu0 0.0
        %1831 = vmatprep.subr.mxu0 0.0
        %1832 = vmatpush1.msra.mxu0 0.0
        %1833 = vmatprep.subr.mxu0 0.0
        %1834 = vmatpush1.msra.mxu0 0.0
        %1835 = vmatprep.subr.mxu0 0.0
        %1836 = vmatpush1.msra.mxu0 0.0
        %1837 = vmatprep.subr.mxu0 0.0
        %1838 = vmatpush1.msra.mxu0 0.0
        %1839 = vmatprep.subr.mxu0 0.0
        %1840 = vmatpush1.msra.mxu0 0.0
        %1841 = vmatprep.subr.mxu0 0.0
        %1842 = vmatpush1.msra.mxu0 0.0
        %1843 = vmatprep.subr.mxu0 0.0
        %1844 = vmatpush1.msra.mxu0 0.0
        %1845 = vmatprep.subr.mxu0 0.0
        %1846 = vmatpush1.msra.mxu0 0.0
        %1847 = vmatprep.subr.mxu0 0.0
        %1848 = vmatpush1.msra.mxu0 0.0
        %1849 = vmatprep.subr.mxu0 0.0
        %1850 = vmatpush1.msra.mxu0 0.0
        %1851 = vmatprep.subr.mxu0 0.0
        %1852 = vmatpush1.msra.mxu0 0.0
        %1853 = vmatprep.subr.mxu0 0.0
        %1854 = vmatpush1.msra.mxu0 0.0
        %1855 = vmatprep.subr.mxu0 0.0
        %1856 = vmatpush1.msra.mxu0 0.0
        %1857 = vmatprep.subr.mxu0 0.0
        %1858 = vmatpush1.msra.mxu0 0.0
        %1859 = vmatprep.subr.mxu0 0.0
        %1860 = vmatpush1.msra.mxu0 0.0
        %1861 = vmatprep.subr.mxu0 0.0
        %1862 = vmatpush1.msra.mxu0 0.0
        %1863 = vmatprep.subr.mxu0 0.0
        %1864 = vmatpush1.msra.mxu0 0.0
        %1865 = vmatprep.subr.mxu0 0.0
        %1866 = vmatpush1.msra.mxu0 0.0
        %1867 = vmatprep.subr.mxu0 0.0
        %1868 = vmatpush1.msra.mxu0 0.0
        %1869 = vmatprep.subr.mxu0 0.0
        %1870 = vmatpush1.msra.mxu0 0.0
        %1871 = vmatprep.subr.mxu0 0.0
        %1872 = vmatpush1.msra.mxu0 0.0
        %1873 = vmatprep.subr.mxu0 0.0
        %1874 = vmatpush1.msra.mxu0 0.0
        %1875 = vmatprep.subr.mxu0 0.0
        %1876 = vmatpush1.msra.mxu0 0.0
        %1877 = vmatprep.subr.mxu0 0.0
        %1878 = vmatpush1.msra.mxu0 0.0
        %1879 = vmatprep.subr.mxu0 0.0
        %1880 = vmatpush1.msra.mxu0 0.0
        %1881 = vmatprep.subr.mxu0 0.0
        %1882 = vmatpush1.msra.mxu0 0.0
        %1883 = vmatprep.subr.mxu0 0.0
        %1884 = vmatpush1.msra.mxu0 0.0
        %1885 = vmatprep.subr.mxu0 0.0
        %1886 = vmatpush1.msra.mxu0 0.0
        %1887 = vmatprep.subr.mxu0 0.0
        %1888 = vmatpush1.msra.mxu0 0.0
        %1889 = vmatprep.mubr.f32.mxu0 0.0
        %1890 = vmatmul.mubr.f32.gmra.mrb[0].mxu0 %v1823
        %v1891 = vpop.f32.mrb[0].mxu0
        %v1892 = vadd.f32 0.0, %v1891
        %v1893 = vpop.f32.mrb[0].mxu0
        %1894 = vdwg.mxu0
        %v1896 = vsel %vm1602, %v1590, 0
        %1898 = vmatprep.subr.mxu0 0.0
        %1899 = vmatpush1.msra.mxu0 %v293
        %1900 = vmatprep.subr.mxu0 0.0
        %1901 = vmatpush1.msra.mxu0 0.0
        %1902 = vmatprep.subr.mxu0 0.0
        %1903 = vmatpush1.msra.mxu0 0.0
        %1904 = vmatprep.subr.mxu0 0.0
        %1905 = vmatpush1.msra.mxu0 0.0
        %1906 = vmatprep.subr.mxu0 0.0
        %1907 = vmatpush1.msra.mxu0 0.0
        %1908 = vmatprep.subr.mxu0 0.0
        %1909 = vmatpush1.msra.mxu0 0.0
        %1910 = vmatprep.subr.mxu0 0.0
        %1911 = vmatpush1.msra.mxu0 0.0
        %1912 = vmatprep.subr.mxu0 0.0
        %1913 = vmatpush1.msra.mxu0 0.0
        %1914 = vmatprep.subr.mxu0 0.0
        %1915 = vmatpush1.msra.mxu0 0.0
        %1916 = vmatprep.subr.mxu0 0.0
        %1917 = vmatpush1.msra.mxu0 0.0
        %1918 = vmatprep.subr.mxu0 0.0
        %1919 = vmatpush1.msra.mxu0 0.0
        %1920 = vmatprep.subr.mxu0 0.0
        %1921 = vmatpush1.msra.mxu0 0.0
        %1922 = vmatprep.subr.mxu0 0.0
        %1923 = vmatpush1.msra.mxu0 0.0
        %1924 = vmatprep.subr.mxu0 0.0
        %1925 = vmatpush1.msra.mxu0 0.0
        %1926 = vmatprep.subr.mxu0 0.0
        %1927 = vmatpush1.msra.mxu0 0.0
        %1928 = vmatprep.subr.mxu0 0.0
        %1929 = vmatpush1.msra.mxu0 0.0
        %1930 = vmatprep.subr.mxu0 0.0
        %1931 = vmatpush1.msra.mxu0 0.0
        %1932 = vmatprep.subr.mxu0 0.0
        %1933 = vmatpush1.msra.mxu0 0.0
        %1934 = vmatprep.subr.mxu0 0.0
        %1935 = vmatpush1.msra.mxu0 0.0
        %1936 = vmatprep.subr.mxu0 0.0
        %1937 = vmatpush1.msra.mxu0 0.0
        %1938 = vmatprep.subr.mxu0 0.0
        %1939 = vmatpush1.msra.mxu0 0.0
        %1940 = vmatprep.subr.mxu0 0.0
        %1941 = vmatpush1.msra.mxu0 0.0
        %1942 = vmatprep.subr.mxu0 0.0
        %1943 = vmatpush1.msra.mxu0 0.0
        %1944 = vmatprep.subr.mxu0 0.0
        %1945 = vmatpush1.msra.mxu0 0.0
        %1946 = vmatprep.subr.mxu0 0.0
        %1947 = vmatpush1.msra.mxu0 0.0
        %1948 = vmatprep.subr.mxu0 0.0
        %1949 = vmatpush1.msra.mxu0 0.0
        %1950 = vmatprep.subr.mxu0 0.0
        %1951 = vmatpush1.msra.mxu0 0.0
        %1952 = vmatprep.subr.mxu0 0.0
        %1953 = vmatpush1.msra.mxu0 0.0
        %1954 = vmatprep.subr.mxu0 0.0
        %1955 = vmatpush1.msra.mxu0 0.0
        %1956 = vmatprep.subr.mxu0 0.0
        %1957 = vmatpush1.msra.mxu0 0.0
        %1958 = vmatprep.subr.mxu0 0.0
        %1959 = vmatpush1.msra.mxu0 0.0
        %1960 = vmatprep.subr.mxu0 0.0
        %1961 = vmatpush1.msra.mxu0 0.0
        %1962 = vmatprep.mubr.f32.mxu0 0.0
        %1963 = vmatmul.mubr.f32.gmra.mrb[0].mxu0 %v1896
        %v1964 = vpop.f32.mrb[0].mxu0
        %v1965 = vadd.f32 0.0, %v1964
        %v1966 = vpop.f32.mrb[0].mxu0
        %1967 = vdwg.mxu0
        %v1969 = vsel %vm1602, %v1591, 0
        %1971 = vmatprep.subr.mxu0 0.0
        %1972 = vmatpush1.msra.mxu0 %v294
        %1973 = vmatprep.subr.mxu0 0.0
        %1974 = vmatpush1.msra.mxu0 0.0
        %1975 = vmatprep.subr.mxu0 0.0
        %1976 = vmatpush1.msra.mxu0 0.0
        %1977 = vmatprep.subr.mxu0 0.0
        %1978 = vmatpush1.msra.mxu0 0.0
        %1979 = vmatprep.subr.mxu0 0.0
        %1980 = vmatpush1.msra.mxu0 0.0
        %1981 = vmatprep.subr.mxu0 0.0
        %1982 = vmatpush1.msra.mxu0 0.0
        %1983 = vmatprep.subr.mxu0 0.0
        %1984 = vmatpush1.msra.mxu0 0.0
        %1985 = vmatprep.subr.mxu0 0.0
        %1986 = vmatpush1.msra.mxu0 0.0
        %1987 = vmatprep.subr.mxu0 0.0
        %1988 = vmatpush1.msra.mxu0 0.0
        %1989 = vmatprep.subr.mxu0 0.0
        %1990 = vmatpush1.msra.mxu0 0.0
        %1991 = vmatprep.subr.mxu0 0.0
        %1992 = vmatpush1.msra.mxu0 0.0
        %1993 = vmatprep.subr.mxu0 0.0
        %1994 = vmatpush1.msra.mxu0 0.0
        %1995 = vmatprep.subr.mxu0 0.0
        %1996 = vmatpush1.msra.mxu0 0.0
        %1997 = vmatprep.subr.mxu0 0.0
        %1998 = vmatpush1.msra.mxu0 0.0
        %1999 = vmatprep.subr.mxu0 0.0
        %2000 = vmatpush1.msra.mxu0 0.0
        %2001 = vmatprep.subr.mxu0 0.0
        %2002 = vmatpush1.msra.mxu0 0.0
        %2003 = vmatprep.subr.mxu0 0.0
        %2004 = vmatpush1.msra.mxu0 0.0
        %2005 = vmatprep.subr.mxu0 0.0
        %2006 = vmatpush1.msra.mxu0 0.0
        %2007 = vmatprep.subr.mxu0 0.0
        %2008 = vmatpush1.msra.mxu0 0.0
        %2009 = vmatprep.subr.mxu0 0.0
        %2010 = vmatpush1.msra.mxu0 0.0
        %2011 = vmatprep.subr.mxu0 0.0
        %2012 = vmatpush1.msra.mxu0 0.0
        %2013 = vmatprep.subr.mxu0 0.0
        %2014 = vmatpush1.msra.mxu0 0.0
        %2015 = vmatprep.subr.mxu0 0.0
        %2016 = vmatpush1.msra.mxu0 0.0
        %2017 = vmatprep.subr.mxu0 0.0
        %2018 = vmatpush1.msra.mxu0 0.0
        %2019 = vmatprep.subr.mxu0 0.0
        %2020 = vmatpush1.msra.mxu0 0.0
        %2021 = vmatprep.subr.mxu0 0.0
        %2022 = vmatpush1.msra.mxu0 0.0
        %2023 = vmatprep.subr.mxu0 0.0
        %2024 = vmatpush1.msra.mxu0 0.0
        %2025 = vmatprep.subr.mxu0 0.0
        %2026 = vmatpush1.msra.mxu0 0.0
        %2027 = vmatprep.subr.mxu0 0.0
        %2028 = vmatpush1.msra.mxu0 0.0
        %2029 = vmatprep.subr.mxu0 0.0
        %2030 = vmatpush1.msra.mxu0 0.0
        %2031 = vmatprep.subr.mxu0 0.0
        %2032 = vmatpush1.msra.mxu0 0.0
        %2033 = vmatprep.subr.mxu0 0.0
        %2034 = vmatpush1.msra.mxu0 0.0
        %2035 = vmatprep.mubr.f32.mxu0 0.0
        %2036 = vmatmul.mubr.f32.gmra.mrb[0].mxu0 %v1969
        %v2037 = vpop.f32.mrb[0].mxu0
        %v2038 = vadd.f32 0.0, %v2037
        %v2039 = vpop.f32.mrb[0].mxu0
        %2040 = vdwg.mxu0
        %v2042 = vsel %vm1602, %v1592, 0
        %2044 = vmatprep.subr.mxu0 0.0
        %2045 = vmatpush1.msra.mxu0 %v295
        %2046 = vmatprep.subr.mxu0 0.0
        %2047 = vmatpush1.msra.mxu0 0.0
        %2048 = vmatprep.subr.mxu0 0.0
        %2049 = vmatpush1.msra.mxu0 0.0
        %2050 = vmatprep.subr.mxu0 0.0
        %2051 = vmatpush1.msra.mxu0 0.0
        %2052 = vmatprep.subr.mxu0 0.0
        %2053 = vmatpush1.msra.mxu0 0.0
        %2054 = vmatprep.subr.mxu0 0.0
        %2055 = vmatpush1.msra.mxu0 0.0
        %2056 = vmatprep.subr.mxu0 0.0
        %2057 = vmatpush1.msra.mxu0 0.0
        %2058 = vmatprep.subr.mxu0 0.0
        %2059 = vmatpush1.msra.mxu0 0.0
        %2060 = vmatprep.subr.mxu0 0.0
        %2061 = vmatpush1.msra.mxu0 0.0
        %2062 = vmatprep.subr.mxu0 0.0
        %2063 = vmatpush1.msra.mxu0 0.0
        %2064 = vmatprep.subr.mxu0 0.0
        %2065 = vmatpush1.msra.mxu0 0.0
        %2066 = vmatprep.subr.mxu0 0.0
        %2067 = vmatpush1.msra.mxu0 0.0
        %2068 = vmatprep.subr.mxu0 0.0
        %2069 = vmatpush1.msra.mxu0 0.0
        %2070 = vmatprep.subr.mxu0 0.0
        %2071 = vmatpush1.msra.mxu0 0.0
        %2072 = vmatprep.subr.mxu0 0.0
        %2073 = vmatpush1.msra.mxu0 0.0
        %2074 = vmatprep.subr.mxu0 0.0
        %2075 = vmatpush1.msra.mxu0 0.0
        %2076 = vmatprep.subr.mxu0 0.0
        %2077 = vmatpush1.msra.mxu0 0.0
        %2078 = vmatprep.subr.mxu0 0.0
        %2079 = vmatpush1.msra.mxu0 0.0
        %2080 = vmatprep.subr.mxu0 0.0
        %2081 = vmatpush1.msra.mxu0 0.0
        %2082 = vmatprep.subr.mxu0 0.0
        %2083 = vmatpush1.msra.mxu0 0.0
        %2084 = vmatprep.subr.mxu0 0.0
        %2085 = vmatpush1.msra.mxu0 0.0
        %2086 = vmatprep.subr.mxu0 0.0
        %2087 = vmatpush1.msra.mxu0 0.0
        %2088 = vmatprep.subr.mxu0 0.0
        %2089 = vmatpush1.msra.mxu0 0.0
        %2090 = vmatprep.subr.mxu0 0.0
        %2091 = vmatpush1.msra.mxu0 0.0
        %2092 = vmatprep.subr.mxu0 0.0
        %2093 = vmatpush1.msra.mxu0 0.0
        %2094 = vmatprep.subr.mxu0 0.0
        %2095 = vmatpush1.msra.mxu0 0.0
        %2096 = vmatprep.subr.mxu0 0.0
        %2097 = vmatpush1.msra.mxu0 0.0
        %2098 = vmatprep.subr.mxu0 0.0
        %2099 = vmatpush1.msra.mxu0 0.0
        %2100 = vmatprep.subr.mxu0 0.0
        %2101 = vmatpush1.msra.mxu0 0.0
        %2102 = vmatprep.subr.mxu0 0.0
        %2103 = vmatpush1.msra.mxu0 0.0
        %2104 = vmatprep.subr.mxu0 0.0
        %2105 = vmatpush1.msra.mxu0 0.0
        %2106 = vmatprep.subr.mxu0 0.0
        %2107 = vmatpush1.msra.mxu0 0.0
        %2108 = vmatprep.mubr.f32.mxu0 0.0
        %2109 = vmatmul.mubr.f32.gmra.mrb[0].mxu0 %v2042
        %v2110 = vpop.f32.mrb[0].mxu0
        %v2111 = vadd.f32 0.0, %v2110
        %v2112 = vpop.f32.mrb[0].mxu0
        %2113 = vdwg.mxu0
        %v2115 = vsel %vm1602, %v1593, 0
        %2117 = vmatprep.subr.mxu0 0.0
        %2118 = vmatpush1.msra.mxu0 %v296
        %2119 = vmatprep.subr.mxu0 0.0
        %2120 = vmatpush1.msra.mxu0 0.0
        %2121 = vmatprep.subr.mxu0 0.0
        %2122 = vmatpush1.msra.mxu0 0.0
        %2123 = vmatprep.subr.mxu0 0.0
        %2124 = vmatpush1.msra.mxu0 0.0
        %2125 = vmatprep.subr.mxu0 0.0
        %2126 = vmatpush1.msra.mxu0 0.0
        %2127 = vmatprep.subr.mxu0 0.0
        %2128 = vmatpush1.msra.mxu0 0.0
        %2129 = vmatprep.subr.mxu0 0.0
        %2130 = vmatpush1.msra.mxu0 0.0
        %2131 = vmatprep.subr.mxu0 0.0
        %2132 = vmatpush1.msra.mxu0 0.0
        %2133 = vmatprep.subr.mxu0 0.0
        %2134 = vmatpush1.msra.mxu0 0.0
        %2135 = vmatprep.subr.mxu0 0.0
        %2136 = vmatpush1.msra.mxu0 0.0
        %2137 = vmatprep.subr.mxu0 0.0
        %2138 = vmatpush1.msra.mxu0 0.0
        %2139 = vmatprep.subr.mxu0 0.0
        %2140 = vmatpush1.msra.mxu0 0.0
        %2141 = vmatprep.subr.mxu0 0.0
        %2142 = vmatpush1.msra.mxu0 0.0
        %2143 = vmatprep.subr.mxu0 0.0
        %2144 = vmatpush1.msra.mxu0 0.0
        %2145 = vmatprep.subr.mxu0 0.0
        %2146 = vmatpush1.msra.mxu0 0.0
        %2147 = vmatprep.subr.mxu0 0.0
        %2148 = vmatpush1.msra.mxu0 0.0
        %2149 = vmatprep.subr.mxu0 0.0
        %2150 = vmatpush1.msra.mxu0 0.0
        %2151 = vmatprep.subr.mxu0 0.0
        %2152 = vmatpush1.msra.mxu0 0.0
        %2153 = vmatprep.subr.mxu0 0.0
        %2154 = vmatpush1.msra.mxu0 0.0
        %2155 = vmatprep.subr.mxu0 0.0
        %2156 = vmatpush1.msra.mxu0 0.0
        %2157 = vmatprep.subr.mxu0 0.0
        %2158 = vmatpush1.msra.mxu0 0.0
        %2159 = vmatprep.subr.mxu0 0.0
        %2160 = vmatpush1.msra.mxu0 0.0
        %2161 = vmatprep.subr.mxu0 0.0
        %2162 = vmatpush1.msra.mxu0 0.0
        %2163 = vmatprep.subr.mxu0 0.0
        %2164 = vmatpush1.msra.mxu0 0.0
        %2165 = vmatprep.subr.mxu0 0.0
        %2166 = vmatpush1.msra.mxu0 0.0
        %2167 = vmatprep.subr.mxu0 0.0
        %2168 = vmatpush1.msra.mxu0 0.0
        %2169 = vmatprep.subr.mxu0 0.0
        %2170 = vmatpush1.msra.mxu0 0.0
        %2171 = vmatprep.subr.mxu0 0.0
        %2172 = vmatpush1.msra.mxu0 0.0
        %2173 = vmatprep.subr.mxu0 0.0
        %2174 = vmatpush1.msra.mxu0 0.0
        %2175 = vmatprep.subr.mxu0 0.0
        %2176 = vmatpush1.msra.mxu0 0.0
        %2177 = vmatprep.subr.mxu0 0.0
        %2178 = vmatpush1.msra.mxu0 0.0
        %2179 = vmatprep.subr.mxu0 0.0
        %2180 = vmatpush1.msra.mxu0 0.0
        %2181 = vmatprep.mubr.f32.mxu0 0.0
        %2182 = vmatmul.mubr.f32.gmra.mrb[0].mxu0 %v2115
        %v2183 = vpop.f32.mrb[0].mxu0
        %v2184 = vadd.f32 0.0, %v2183
        %v2185 = vpop.f32.mrb[0].mxu0
        %2186 = vdwg.mxu0
        %v2188 = vsel %vm1602, %v1594, 0
        %2190 = vmatprep.subr.mxu0 0.0
        %2191 = vmatpush1.msra.mxu0 %v297
        %2192 = vmatprep.subr.mxu0 0.0
        %2193 = vmatpush1.msra.mxu0 0.0
        %2194 = vmatprep.subr.mxu0 0.0
        %2195 = vmatpush1.msra.mxu0 0.0
        %2196 = vmatprep.subr.mxu0 0.0
        %2197 = vmatpush1.msra.mxu0 0.0
        %2198 = vmatprep.subr.mxu0 0.0
        %2199 = vmatpush1.msra.mxu0 0.0
        %2200 = vmatprep.subr.mxu0 0.0
        %2201 = vmatpush1.msra.mxu0 0.0
        %2202 = vmatprep.subr.mxu0 0.0
        %2203 = vmatpush1.msra.mxu0 0.0
        %2204 = vmatprep.subr.mxu0 0.0
        %2205 = vmatpush1.msra.mxu0 0.0
        %2206 = vmatprep.subr.mxu0 0.0
        %2207 = vmatpush1.msra.mxu0 0.0
        %2208 = vmatprep.subr.mxu0 0.0
        %2209 = vmatpush1.msra.mxu0 0.0
        %2210 = vmatprep.subr.mxu0 0.0
        %2211 = vmatpush1.msra.mxu0 0.0
        %2212 = vmatprep.subr.mxu0 0.0
        %2213 = vmatpush1.msra.mxu0 0.0
        %2214 = vmatprep.subr.mxu0 0.0
        %2215 = vmatpush1.msra.mxu0 0.0
        %2216 = vmatprep.subr.mxu0 0.0
        %2217 = vmatpush1.msra.mxu0 0.0
        %2218 = vmatprep.subr.mxu0 0.0
        %2219 = vmatpush1.msra.mxu0 0.0
        %2220 = vmatprep.subr.mxu0 0.0
        %2221 = vmatpush1.msra.mxu0 0.0
        %2222 = vmatprep.subr.mxu0 0.0
        %2223 = vmatpush1.msra.mxu0 0.0
        %2224 = vmatprep.subr.mxu0 0.0
        %2225 = vmatpush1.msra.mxu0 0.0
        %2226 = vmatprep.subr.mxu0 0.0
        %2227 = vmatpush1.msra.mxu0 0.0
        %2228 = vmatprep.subr.mxu0 0.0
        %2229 = vmatpush1.msra.mxu0 0.0
        %2230 = vmatprep.subr.mxu0 0.0
        %2231 = vmatpush1.msra.mxu0 0.0
        %2232 = vmatprep.subr.mxu0 0.0
        %2233 = vmatpush1.msra.mxu0 0.0
        %2234 = vmatprep.subr.mxu0 0.0
        %2235 = vmatpush1.msra.mxu0 0.0
        %2236 = vmatprep.subr.mxu0 0.0
        %2237 = vmatpush1.msra.mxu0 0.0
        %2238 = vmatprep.subr.mxu0 0.0
        %2239 = vmatpush1.msra.mxu0 0.0
        %2240 = vmatprep.subr.mxu0 0.0
        %2241 = vmatpush1.msra.mxu0 0.0
        %2242 = vmatprep.subr.mxu0 0.0
        %2243 = vmatpush1.msra.mxu0 0.0
        %2244 = vmatprep.subr.mxu0 0.0
        %2245 = vmatpush1.msra.mxu0 0.0
        %2246 = vmatprep.subr.mxu0 0.0
        %2247 = vmatpush1.msra.mxu0 0.0
        %2248 = vmatprep.subr.mxu0 0.0
        %2249 = vmatpush1.msra.mxu0 0.0
        %2250 = vmatprep.subr.mxu0 0.0
        %2251 = vmatpush1.msra.mxu0 0.0
        %2252 = vmatprep.subr.mxu0 0.0
        %2253 = vmatpush1.msra.mxu0 0.0
        %2254 = vmatprep.mubr.f32.mxu0 0.0
        %2255 = vmatmul.mubr.f32.gmra.mrb[0].mxu0 %v2188
        %v2256 = vpop.f32.mrb[0].mxu0
        %v2257 = vadd.f32 0.0, %v2256
        %v2258 = vpop.f32.mrb[0].mxu0
        %2259 = vdwg.mxu0
        %v2261 = vsel %vm1602, %v1595, 0
        %2263 = vmatprep.subr.mxu0 0.0
        %2264 = vmatpush1.msra.mxu0 %v298
        %2265 = vmatprep.subr.mxu0 0.0
        %2266 = vmatpush1.msra.mxu0 0.0
        %2267 = vmatprep.subr.mxu0 0.0
        %2268 = vmatpush1.msra.mxu0 0.0
        %2269 = vmatprep.subr.mxu0 0.0
        %2270 = vmatpush1.msra.mxu0 0.0
        %2271 = vmatprep.subr.mxu0 0.0
        %2272 = vmatpush1.msra.mxu0 0.0
        %2273 = vmatprep.subr.mxu0 0.0
        %2274 = vmatpush1.msra.mxu0 0.0
        %2275 = vmatprep.subr.mxu0 0.0
        %2276 = vmatpush1.msra.mxu0 0.0
        %2277 = vmatprep.subr.mxu0 0.0
        %2278 = vmatpush1.msra.mxu0 0.0
        %2279 = vmatprep.subr.mxu0 0.0
        %2280 = vmatpush1.msra.mxu0 0.0
        %2281 = vmatprep.subr.mxu0 0.0
        %2282 = vmatpush1.msra.mxu0 0.0
        %2283 = vmatprep.subr.mxu0 0.0
        %2284 = vmatpush1.msra.mxu0 0.0
        %2285 = vmatprep.subr.mxu0 0.0
        %2286 = vmatpush1.msra.mxu0 0.0
        %2287 = vmatprep.subr.mxu0 0.0
        %2288 = vmatpush1.msra.mxu0 0.0
        %2289 = vmatprep.subr.mxu0 0.0
        %2290 = vmatpush1.msra.mxu0 0.0
        %2291 = vmatprep.subr.mxu0 0.0
        %2292 = vmatpush1.msra.mxu0 0.0
        %2293 = vmatprep.subr.mxu0 0.0
        %2294 = vmatpush1.msra.mxu0 0.0
        %2295 = vmatprep.subr.mxu0 0.0
        %2296 = vmatpush1.msra.mxu0 0.0
        %2297 = vmatprep.subr.mxu0 0.0
        %2298 = vmatpush1.msra.mxu0 0.0
        %2299 = vmatprep.subr.mxu0 0.0
        %2300 = vmatpush1.msra.mxu0 0.0
        %2301 = vmatprep.subr.mxu0 0.0
        %2302 = vmatpush1.msra.mxu0 0.0
        %2303 = vmatprep.subr.mxu0 0.0
        %2304 = vmatpush1.msra.mxu0 0.0
        %2305 = vmatprep.subr.mxu0 0.0
        %2306 = vmatpush1.msra.mxu0 0.0
        %2307 = vmatprep.subr.mxu0 0.0
        %2308 = vmatpush1.msra.mxu0 0.0
        %2309 = vmatprep.subr.mxu0 0.0
        %2310 = vmatpush1.msra.mxu0 0.0
        %2311 = vmatprep.subr.mxu0 0.0
        %2312 = vmatpush1.msra.mxu0 0.0
        %2313 = vmatprep.subr.mxu0 0.0
        %2314 = vmatpush1.msra.mxu0 0.0
        %2315 = vmatprep.subr.mxu0 0.0
        %2316 = vmatpush1.msra.mxu0 0.0
        %2317 = vmatprep.subr.mxu0 0.0
        %2318 = vmatpush1.msra.mxu0 0.0
        %2319 = vmatprep.subr.mxu0 0.0
        %2320 = vmatpush1.msra.mxu0 0.0
        %2321 = vmatprep.subr.mxu0 0.0
        %2322 = vmatpush1.msra.mxu0 0.0
        %2323 = vmatprep.subr.mxu0 0.0
        %2324 = vmatpush1.msra.mxu0 0.0
        %2325 = vmatprep.subr.mxu0 0.0
        %2326 = vmatpush1.msra.mxu0 0.0
        %2327 = vmatprep.mubr.f32.mxu0 0.0
        %2328 = vmatmul.mubr.f32.gmra.mrb[0].mxu0 %v2261
        %v2329 = vpop.f32.mrb[0].mxu0
        %v2330 = vadd.f32 0.0, %v2329
        %v2331 = vpop.f32.mrb[0].mxu0
        %2332 = vdwg.mxu0
        %v2334 = vsel %vm1602, %v1596, 0
        %2336 = vmatprep.subr.mxu0 0.0
        %2337 = vmatpush1.msra.mxu0 %v299
        %2338 = vmatprep.subr.mxu0 0.0
        %2339 = vmatpush1.msra.mxu0 0.0
        %2340 = vmatprep.subr.mxu0 0.0
        %2341 = vmatpush1.msra.mxu0 0.0
        %2342 = vmatprep.subr.mxu0 0.0
        %2343 = vmatpush1.msra.mxu0 0.0
        %2344 = vmatprep.subr.mxu0 0.0
        %2345 = vmatpush1.msra.mxu0 0.0
        %2346 = vmatprep.subr.mxu0 0.0
        %2347 = vmatpush1.msra.mxu0 0.0
        %2348 = vmatprep.subr.mxu0 0.0
        %2349 = vmatpush1.msra.mxu0 0.0
        %2350 = vmatprep.subr.mxu0 0.0
        %2351 = vmatpush1.msra.mxu0 0.0
        %2352 = vmatprep.subr.mxu0 0.0
        %2353 = vmatpush1.msra.mxu0 0.0
        %2354 = vmatprep.subr.mxu0 0.0
        %2355 = vmatpush1.msra.mxu0 0.0
        %2356 = vmatprep.subr.mxu0 0.0
        %2357 = vmatpush1.msra.mxu0 0.0
        %2358 = vmatprep.subr.mxu0 0.0
        %2359 = vmatpush1.msra.mxu0 0.0
        %2360 = vmatprep.subr.mxu0 0.0
        %2361 = vmatpush1.msra.mxu0 0.0
        %2362 = vmatprep.subr.mxu0 0.0
        %2363 = vmatpush1.msra.mxu0 0.0
        %2364 = vmatprep.subr.mxu0 0.0
        %2365 = vmatpush1.msra.mxu0 0.0
        %2366 = vmatprep.subr.mxu0 0.0
        %2367 = vmatpush1.msra.mxu0 0.0
        %2368 = vmatprep.subr.mxu0 0.0
        %2369 = vmatpush1.msra.mxu0 0.0
        %2370 = vmatprep.subr.mxu0 0.0
        %2371 = vmatpush1.msra.mxu0 0.0
        %2372 = vmatprep.subr.mxu0 0.0
        %2373 = vmatpush1.msra.mxu0 0.0
        %2374 = vmatprep.subr.mxu0 0.0
        %2375 = vmatpush1.msra.mxu0 0.0
        %2376 = vmatprep.subr.mxu0 0.0
        %2377 = vmatpush1.msra.mxu0 0.0
        %2378 = vmatprep.subr.mxu0 0.0
        %2379 = vmatpush1.msra.mxu0 0.0
        %2380 = vmatprep.subr.mxu0 0.0
        %2381 = vmatpush1.msra.mxu0 0.0
        %2382 = vmatprep.subr.mxu0 0.0
        %2383 = vmatpush1.msra.mxu0 0.0
        %2384 = vmatprep.subr.mxu0 0.0
        %2385 = vmatpush1.msra.mxu0 0.0
        %2386 = vmatprep.subr.mxu0 0.0
        %2387 = vmatpush1.msra.mxu0 0.0
        %2388 = vmatprep.subr.mxu0 0.0
        %2389 = vmatpush1.msra.mxu0 0.0
        %2390 = vmatprep.subr.mxu0 0.0
        %2391 = vmatpush1.msra.mxu0 0.0
        %2392 = vmatprep.subr.mxu0 0.0
        %2393 = vmatpush1.msra.mxu0 0.0
        %2394 = vmatprep.subr.mxu0 0.0
        %2395 = vmatpush1.msra.mxu0 0.0
        %2396 = vmatprep.subr.mxu0 0.0
        %2397 = vmatpush1.msra.mxu0 0.0
        %2398 = vmatprep.subr.mxu0 0.0
        %2399 = vmatpush1.msra.mxu0 0.0
        %2400 = vmatprep.mubr.f32.mxu0 0.0
        %2401 = vmatmul.mubr.f32.gmra.mrb[0].mxu0 %v2334
        %v2402 = vpop.f32.mrb[0].mxu0
        %v2403 = vadd.f32 0.0, %v2402
        %v2404 = vpop.f32.mrb[0].mxu0
        %2405 = vdwg.mxu0
        %v2407 = vsel %vm1602, %v1597, 0
        %2409 = vmatprep.subr.mxu0 0.0
        %2410 = vmatpush1.msra.mxu0 %v300
        %2411 = vmatprep.subr.mxu0 0.0
        %2412 = vmatpush1.msra.mxu0 0.0
        %2413 = vmatprep.subr.mxu0 0.0
        %2414 = vmatpush1.msra.mxu0 0.0
        %2415 = vmatprep.subr.mxu0 0.0
        %2416 = vmatpush1.msra.mxu0 0.0
        %2417 = vmatprep.subr.mxu0 0.0
        %2418 = vmatpush1.msra.mxu0 0.0
        %2419 = vmatprep.subr.mxu0 0.0
        %2420 = vmatpush1.msra.mxu0 0.0
        %2421 = vmatprep.subr.mxu0 0.0
        %2422 = vmatpush1.msra.mxu0 0.0
        %2423 = vmatprep.subr.mxu0 0.0
        %2424 = vmatpush1.msra.mxu0 0.0
        %2425 = vmatprep.subr.mxu0 0.0
        %2426 = vmatpush1.msra.mxu0 0.0
        %2427 = vmatprep.subr.mxu0 0.0
        %2428 = vmatpush1.msra.mxu0 0.0
        %2429 = vmatprep.subr.mxu0 0.0
        %2430 = vmatpush1.msra.mxu0 0.0
        %2431 = vmatprep.subr.mxu0 0.0
        %2432 = vmatpush1.msra.mxu0 0.0
        %2433 = vmatprep.subr.mxu0 0.0
        %2434 = vmatpush1.msra.mxu0 0.0
        %2435 = vmatprep.subr.mxu0 0.0
        %2436 = vmatpush1.msra.mxu0 0.0
        %2437 = vmatprep.subr.mxu0 0.0
        %2438 = vmatpush1.msra.mxu0 0.0
        %2439 = vmatprep.subr.mxu0 0.0
        %2440 = vmatpush1.msra.mxu0 0.0
        %2441 = vmatprep.subr.mxu0 0.0
        %2442 = vmatpush1.msra.mxu0 0.0
        %2443 = vmatprep.subr.mxu0 0.0
        %2444 = vmatpush1.msra.mxu0 0.0
        %2445 = vmatprep.subr.mxu0 0.0
        %2446 = vmatpush1.msra.mxu0 0.0
        %2447 = vmatprep.subr.mxu0 0.0
        %2448 = vmatpush1.msra.mxu0 0.0
        %2449 = vmatprep.subr.mxu0 0.0
        %2450 = vmatpush1.msra.mxu0 0.0
        %2451 = vmatprep.subr.mxu0 0.0
        %2452 = vmatpush1.msra.mxu0 0.0
        %2453 = vmatprep.subr.mxu0 0.0
        %2454 = vmatpush1.msra.mxu0 0.0
        %2455 = vmatprep.subr.mxu0 0.0
        %2456 = vmatpush1.msra.mxu0 0.0
        %2457 = vmatprep.subr.mxu0 0.0
        %2458 = vmatpush1.msra.mxu0 0.0
        %2459 = vmatprep.subr.mxu0 0.0
        %2460 = vmatpush1.msra.mxu0 0.0
        %2461 = vmatprep.subr.mxu0 0.0
        %2462 = vmatpush1.msra.mxu0 0.0
        %2463 = vmatprep.subr.mxu0 0.0
        %2464 = vmatpush1.msra.mxu0 0.0
        %2465 = vmatprep.subr.mxu0 0.0
        %2466 = vmatpush1.msra.mxu0 0.0
        %2467 = vmatprep.subr.mxu0 0.0
        %2468 = vmatpush1.msra.mxu0 0.0
        %2469 = vmatprep.subr.mxu0 0.0
        %2470 = vmatpush1.msra.mxu0 0.0
        %2471 = vmatprep.subr.mxu0 0.0
        %2472 = vmatpush1.msra.mxu0 0.0
        %2473 = vmatprep.mubr.f32.mxu0 0.0
        %2474 = vmatmul.mubr.f32.gmra.mrb[0].mxu0 %v2407
        %v2475 = vpop.f32.mrb[0].mxu0
        %v2476 = vadd.f32 0.0, %v2475
        %v2477 = vpop.f32.mrb[0].mxu0
        %2478 = vdwg.mxu0
        %v2480 = vsel %vm1602, %v1598, 0
        %2482 = vmatprep.subr.mxu0 0.0
        %2483 = vmatpush1.msra.mxu0 %v301
        %2484 = vmatprep.subr.mxu0 0.0
        %2485 = vmatpush1.msra.mxu0 0.0
        %2486 = vmatprep.subr.mxu0 0.0
        %2487 = vmatpush1.msra.mxu0 0.0
        %2488 = vmatprep.subr.mxu0 0.0
        %2489 = vmatpush1.msra.mxu0 0.0
        %2490 = vmatprep.subr.mxu0 0.0
        %2491 = vmatpush1.msra.mxu0 0.0
        %2492 = vmatprep.subr.mxu0 0.0
        %2493 = vmatpush1.msra.mxu0 0.0
        %2494 = vmatprep.subr.mxu0 0.0
        %2495 = vmatpush1.msra.mxu0 0.0
        %2496 = vmatprep.subr.mxu0 0.0
        %2497 = vmatpush1.msra.mxu0 0.0
        %2498 = vmatprep.subr.mxu0 0.0
        %2499 = vmatpush1.msra.mxu0 0.0
        %2500 = vmatprep.subr.mxu0 0.0
        %2501 = vmatpush1.msra.mxu0 0.0
        %2502 = vmatprep.subr.mxu0 0.0
        %2503 = vmatpush1.msra.mxu0 0.0
        %2504 = vmatprep.subr.mxu0 0.0
        %2505 = vmatpush1.msra.mxu0 0.0
        %2506 = vmatprep.subr.mxu0 0.0
        %2507 = vmatpush1.msra.mxu0 0.0
        %2508 = vmatprep.subr.mxu0 0.0
        %2509 = vmatpush1.msra.mxu0 0.0
        %2510 = vmatprep.subr.mxu0 0.0
        %2511 = vmatpush1.msra.mxu0 0.0
        %2512 = vmatprep.subr.mxu0 0.0
        %2513 = vmatpush1.msra.mxu0 0.0
        %2514 = vmatprep.subr.mxu0 0.0
        %2515 = vmatpush1.msra.mxu0 0.0
        %2516 = vmatprep.subr.mxu0 0.0
        %2517 = vmatpush1.msra.mxu0 0.0
        %2518 = vmatprep.subr.mxu0 0.0
        %2519 = vmatpush1.msra.mxu0 0.0
        %2520 = vmatprep.subr.mxu0 0.0
        %2521 = vmatpush1.msra.mxu0 0.0
        %2522 = vmatprep.subr.mxu0 0.0
        %2523 = vmatpush1.msra.mxu0 0.0
        %2524 = vmatprep.subr.mxu0 0.0
        %2525 = vmatpush1.msra.mxu0 0.0
        %2526 = vmatprep.subr.mxu0 0.0
        %2527 = vmatpush1.msra.mxu0 0.0
        %2528 = vmatprep.subr.mxu0 0.0
        %2529 = vmatpush1.msra.mxu0 0.0
        %2530 = vmatprep.subr.mxu0 0.0
        %2531 = vmatpush1.msra.mxu0 0.0
        %2532 = vmatprep.subr.mxu0 0.0
        %2533 = vmatpush1.msra.mxu0 0.0
        %2534 = vmatprep.subr.mxu0 0.0
        %2535 = vmatpush1.msra.mxu0 0.0
        %2536 = vmatprep.subr.mxu0 0.0
        %2537 = vmatpush1.msra.mxu0 0.0
        %2538 = vmatprep.subr.mxu0 0.0
        %2539 = vmatpush1.msra.mxu0 0.0
        %2540 = vmatprep.subr.mxu0 0.0
        %2541 = vmatpush1.msra.mxu0 0.0
        %2542 = vmatprep.subr.mxu0 0.0
        %2543 = vmatpush1.msra.mxu0 0.0
        %2544 = vmatprep.subr.mxu0 0.0
        %2545 = vmatpush1.msra.mxu0 0.0
        %2546 = vmatprep.mubr.f32.mxu0 0.0
        %2547 = vmatmul.mubr.f32.gmra.mrb[0].mxu0 %v2480
        %v2548 = vpop.f32.mrb[0].mxu0
        %v2549 = vadd.f32 0.0, %v2548
        %v2550 = vpop.f32.mrb[0].mxu0
        %2551 = vdwg.mxu0
        %v2553 = vsel %vm1602, %v1599, 0
        %2555 = vmatprep.subr.mxu0 0.0
        %2556 = vmatpush1.msra.mxu0 %v302
        %2557 = vmatprep.subr.mxu0 0.0
        %2558 = vmatpush1.msra.mxu0 0.0
        %2559 = vmatprep.subr.mxu0 0.0
        %2560 = vmatpush1.msra.mxu0 0.0
        %2561 = vmatprep.subr.mxu0 0.0
        %2562 = vmatpush1.msra.mxu0 0.0
        %2563 = vmatprep.subr.mxu0 0.0
        %2564 = vmatpush1.msra.mxu0 0.0
        %2565 = vmatprep.subr.mxu0 0.0
        %2566 = vmatpush1.msra.mxu0 0.0
        %2567 = vmatprep.subr.mxu0 0.0
        %2568 = vmatpush1.msra.mxu0 0.0
        %2569 = vmatprep.subr.mxu0 0.0
        %2570 = vmatpush1.msra.mxu0 0.0
        %2571 = vmatprep.subr.mxu0 0.0
        %2572 = vmatpush1.msra.mxu0 0.0
        %2573 = vmatprep.subr.mxu0 0.0
        %2574 = vmatpush1.msra.mxu0 0.0
        %2575 = vmatprep.subr.mxu0 0.0
        %2576 = vmatpush1.msra.mxu0 0.0
        %2577 = vmatprep.subr.mxu0 0.0
        %2578 = vmatpush1.msra.mxu0 0.0
        %2579 = vmatprep.subr.mxu0 0.0
        %2580 = vmatpush1.msra.mxu0 0.0
        %2581 = vmatprep.subr.mxu0 0.0
        %2582 = vmatpush1.msra.mxu0 0.0
        %2583 = vmatprep.subr.mxu0 0.0
        %2584 = vmatpush1.msra.mxu0 0.0
        %2585 = vmatprep.subr.mxu0 0.0
        %2586 = vmatpush1.msra.mxu0 0.0
        %2587 = vmatprep.subr.mxu0 0.0
        %2588 = vmatpush1.msra.mxu0 0.0
        %2589 = vmatprep.subr.mxu0 0.0
        %2590 = vmatpush1.msra.mxu0 0.0
        %2591 = vmatprep.subr.mxu0 0.0
        %2592 = vmatpush1.msra.mxu0 0.0
        %2593 = vmatprep.subr.mxu0 0.0
        %2594 = vmatpush1.msra.mxu0 0.0
        %2595 = vmatprep.subr.mxu0 0.0
        %2596 = vmatpush1.msra.mxu0 0.0
        %2597 = vmatprep.subr.mxu0 0.0
        %2598 = vmatpush1.msra.mxu0 0.0
        %2599 = vmatprep.subr.mxu0 0.0
        %2600 = vmatpush1.msra.mxu0 0.0
        %2601 = vmatprep.subr.mxu0 0.0
        %2602 = vmatpush1.msra.mxu0 0.0
        %2603 = vmatprep.subr.mxu0 0.0
        %2604 = vmatpush1.msra.mxu0 0.0
        %2605 = vmatprep.subr.mxu0 0.0
        %2606 = vmatpush1.msra.mxu0 0.0
        %2607 = vmatprep.subr.mxu0 0.0
        %2608 = vmatpush1.msra.mxu0 0.0
        %2609 = vmatprep.subr.mxu0 0.0
        %2610 = vmatpush1.msra.mxu0 0.0
        %2611 = vmatprep.subr.mxu0 0.0
        %2612 = vmatpush1.msra.mxu0 0.0
        %2613 = vmatprep.subr.mxu0 0.0
        %2614 = vmatpush1.msra.mxu0 0.0
        %2615 = vmatprep.subr.mxu0 0.0
        %2616 = vmatpush1.msra.mxu0 0.0
        %2617 = vmatprep.subr.mxu0 0.0
        %2618 = vmatpush1.msra.mxu0 0.0
        %2619 = vmatprep.mubr.f32.mxu0 0.0
        %2620 = vmatmul.mubr.f32.gmra.mrb[0].mxu0 %v2553
        %v2621 = vpop.f32.mrb[0].mxu0
        %v2622 = vadd.f32 0.0, %v2621
        %v2623 = vpop.f32.mrb[0].mxu0
        %2624 = vdwg.mxu0
        %v2626 = vsel %vm1602, %v1600, 0
        %2628 = vmatprep.subr.mxu0 0.0
        %2629 = vmatpush1.msra.mxu0 %v303
        %2630 = vmatprep.subr.mxu0 0.0
        %2631 = vmatpush1.msra.mxu0 0.0
        %2632 = vmatprep.subr.mxu0 0.0
        %2633 = vmatpush1.msra.mxu0 0.0
        %2634 = vmatprep.subr.mxu0 0.0
        %2635 = vmatpush1.msra.mxu0 0.0
        %2636 = vmatprep.subr.mxu0 0.0
        %2637 = vmatpush1.msra.mxu0 0.0
        %2638 = vmatprep.subr.mxu0 0.0
        %2639 = vmatpush1.msra.mxu0 0.0
        %2640 = vmatprep.subr.mxu0 0.0
        %2641 = vmatpush1.msra.mxu0 0.0
        %2642 = vmatprep.subr.mxu0 0.0
        %2643 = vmatpush1.msra.mxu0 0.0
        %2644 = vmatprep.subr.mxu0 0.0
        %2645 = vmatpush1.msra.mxu0 0.0
        %2646 = vmatprep.subr.mxu0 0.0
        %2647 = vmatpush1.msra.mxu0 0.0
        %2648 = vmatprep.subr.mxu0 0.0
        %2649 = vmatpush1.msra.mxu0 0.0
        %2650 = vmatprep.subr.mxu0 0.0
        %2651 = vmatpush1.msra.mxu0 0.0
        %2652 = vmatprep.subr.mxu0 0.0
        %2653 = vmatpush1.msra.mxu0 0.0
        %2654 = vmatprep.subr.mxu0 0.0
        %2655 = vmatpush1.msra.mxu0 0.0
        %2656 = vmatprep.subr.mxu0 0.0
        %2657 = vmatpush1.msra.mxu0 0.0
        %2658 = vmatprep.subr.mxu0 0.0
        %2659 = vmatpush1.msra.mxu0 0.0
        %2660 = vmatprep.subr.mxu0 0.0
        %2661 = vmatpush1.msra.mxu0 0.0
        %2662 = vmatprep.subr.mxu0 0.0
        %2663 = vmatpush1.msra.mxu0 0.0
        %2664 = vmatprep.subr.mxu0 0.0
        %2665 = vmatpush1.msra.mxu0 0.0
        %2666 = vmatprep.subr.mxu0 0.0
        %2667 = vmatpush1.msra.mxu0 0.0
        %2668 = vmatprep.subr.mxu0 0.0
        %2669 = vmatpush1.msra.mxu0 0.0
        %2670 = vmatprep.subr.mxu0 0.0
        %2671 = vmatpush1.msra.mxu0 0.0
        %2672 = vmatprep.subr.mxu0 0.0
        %2673 = vmatpush1.msra.mxu0 0.0
        %2674 = vmatprep.subr.mxu0 0.0
        %2675 = vmatpush1.msra.mxu0 0.0
        %2676 = vmatprep.subr.mxu0 0.0
        %2677 = vmatpush1.msra.mxu0 0.0
        %2678 = vmatprep.subr.mxu0 0.0
        %2679 = vmatpush1.msra.mxu0 0.0
        %2680 = vmatprep.subr.mxu0 0.0
        %2681 = vmatpush1.msra.mxu0 0.0
        %2682 = vmatprep.subr.mxu0 0.0
        %2683 = vmatpush1.msra.mxu0 0.0
        %2684 = vmatprep.subr.mxu0 0.0
        %2685 = vmatpush1.msra.mxu0 0.0
        %2686 = vmatprep.subr.mxu0 0.0
        %2687 = vmatpush1.msra.mxu0 0.0
        %2688 = vmatprep.subr.mxu0 0.0
        %2689 = vmatpush1.msra.mxu0 0.0
        %2690 = vmatprep.subr.mxu0 0.0
        %2691 = vmatpush1.msra.mxu0 0.0
        %2692 = vmatprep.mubr.f32.mxu0 0.0
        %2693 = vmatmul.mubr.f32.gmra.mrb[0].mxu0 %v2626
        %v2694 = vpop.f32.mrb[0].mxu0
        %v2695 = vadd.f32 0.0, %v2694
        %v2696 = vpop.f32.mrb[0].mxu0
        %2697 = vdwg.mxu0
        %v2699 = vsel %vm1602, %v1601, 0
        %2701 = vmatprep.subr.mxu0 0.0
        %2702 = vmatpush1.msra.mxu0 %v304
        %2703 = vmatprep.subr.mxu0 0.0
        %2704 = vmatpush1.msra.mxu0 0.0
        %2705 = vmatprep.subr.mxu0 0.0
        %2706 = vmatpush1.msra.mxu0 0.0
        %2707 = vmatprep.subr.mxu0 0.0
        %2708 = vmatpush1.msra.mxu0 0.0
        %2709 = vmatprep.subr.mxu0 0.0
        %2710 = vmatpush1.msra.mxu0 0.0
        %2711 = vmatprep.subr.mxu0 0.0
        %2712 = vmatpush1.msra.mxu0 0.0
        %2713 = vmatprep.subr.mxu0 0.0
        %2714 = vmatpush1.msra.mxu0 0.0
        %2715 = vmatprep.subr.mxu0 0.0
        %2716 = vmatpush1.msra.mxu0 0.0
        %2717 = vmatprep.subr.mxu0 0.0
        %2718 = vmatpush1.msra.mxu0 0.0
        %2719 = vmatprep.subr.mxu0 0.0
        %2720 = vmatpush1.msra.mxu0 0.0
        %2721 = vmatprep.subr.mxu0 0.0
        %2722 = vmatpush1.msra.mxu0 0.0
        %2723 = vmatprep.subr.mxu0 0.0
        %2724 = vmatpush1.msra.mxu0 0.0
        %2725 = vmatprep.subr.mxu0 0.0
        %2726 = vmatpush1.msra.mxu0 0.0
        %2727 = vmatprep.subr.mxu0 0.0
        %2728 = vmatpush1.msra.mxu0 0.0
        %2729 = vmatprep.subr.mxu0 0.0
        %2730 = vmatpush1.msra.mxu0 0.0
        %2731 = vmatprep.subr.mxu0 0.0
        %2732 = vmatpush1.msra.mxu0 0.0
        %2733 = vmatprep.subr.mxu0 0.0
        %2734 = vmatpush1.msra.mxu0 0.0
        %2735 = vmatprep.subr.mxu0 0.0
        %2736 = vmatpush1.msra.mxu0 0.0
        %2737 = vmatprep.subr.mxu0 0.0
        %2738 = vmatpush1.msra.mxu0 0.0
        %2739 = vmatprep.subr.mxu0 0.0
        %2740 = vmatpush1.msra.mxu0 0.0
        %2741 = vmatprep.subr.mxu0 0.0
        %2742 = vmatpush1.msra.mxu0 0.0
        %2743 = vmatprep.subr.mxu0 0.0
        %2744 = vmatpush1.msra.mxu0 0.0
        %2745 = vmatprep.subr.mxu0 0.0
        %2746 = vmatpush1.msra.mxu0 0.0
        %2747 = vmatprep.subr.mxu0 0.0
        %2748 = vmatpush1.msra.mxu0 0.0
        %2749 = vmatprep.subr.mxu0 0.0
        %2750 = vmatpush1.msra.mxu0 0.0
        %2751 = vmatprep.subr.mxu0 0.0
        %2752 = vmatpush1.msra.mxu0 0.0
        %2753 = vmatprep.subr.mxu0 0.0
        %2754 = vmatpush1.msra.mxu0 0.0
        %2755 = vmatprep.subr.mxu0 0.0
        %2756 = vmatpush1.msra.mxu0 0.0
        %2757 = vmatprep.subr.mxu0 0.0
        %2758 = vmatpush1.msra.mxu0 0.0
        %2759 = vmatprep.subr.mxu0 0.0
        %2760 = vmatpush1.msra.mxu0 0.0
        %2761 = vmatprep.subr.mxu0 0.0
        %2762 = vmatpush1.msra.mxu0 0.0
        %2763 = vmatprep.subr.mxu0 0.0
        %2764 = vmatpush1.msra.mxu0 0.0
        %2765 = vmatprep.mubr.f32.mxu0 0.0
        %2766 = vmatmul.mubr.f32.gmra.mrb[0].mxu0 %v2699
        %v2767 = vpop.f32.mrb[0].mxu0
        %v2768 = vadd.f32 0.0, %v2767
        %v2769 = vpop.f32.mrb[0].mxu0
        %2770 = vdwg.mxu0
        %2771 = vst [vmem:[#allocation2] sm:$0x1] %v1673
        %2772 = vst [vmem:[#allocation2 + $0x1] sm:$0x1] %v1746
        %2773 = vst [vmem:[#allocation2 + $0x2] sm:$0x1] %v1819
        %2774 = vst [vmem:[#allocation2 + $0x3] sm:$0x1] %v1892
        %2775 = vst [vmem:[#allocation2 + $0x4] sm:$0x1] %v1965
        %2776 = vst [vmem:[#allocation2 + $0x5] sm:$0x1] %v2038
        %2777 = vst [vmem:[#allocation2 + $0x6] sm:$0x1] %v2111
        %2778 = vst [vmem:[#allocation2 + $0x7] sm:$0x1] %v2184
        %2779 = vst [vmem:[#allocation2 + $0x8] sm:$0x1] %v2257
        %2780 = vst [vmem:[#allocation2 + $0x9] sm:$0x1] %v2330
        %2781 = vst [vmem:[#allocation2 + $0xa] sm:$0x1] %v2403
        %2782 = vst [vmem:[#allocation2 + $0xb] sm:$0x1] %v2476
        %2783 = vst [vmem:[#allocation2 + $0xc] sm:$0x1] %v2549
        %2784 = vst [vmem:[#allocation2 + $0xd] sm:$0x1] %v2622
        %2785 = vst [vmem:[#allocation2 + $0xe] sm:$0x1] %v2695
        %2786 = vst [vmem:[#allocation2 + $0xf] sm:$0x1] %v2768
        %v2787 = vld [vmem:[#allocation2] sm:$0x1]
        %v2788 = vld [vmem:[#allocation2 + $0x1] sm:$0x1]
        %v2789 = vld [vmem:[#allocation2 + $0x2] sm:$0x1]
        %v2790 = vld [vmem:[#allocation2 + $0x3] sm:$0x1]
        %v2791 = vld [vmem:[#allocation2 + $0x4] sm:$0x1]
        %v2792 = vld [vmem:[#allocation2 + $0x5] sm:$0x1]
        %v2793 = vld [vmem:[#allocation2 + $0x6] sm:$0x1]
        %v2794 = vld [vmem:[#allocation2 + $0x7] sm:$0x1]
        %v2795 = vld [vmem:[#allocation2 + $0x8] sm:$0x1]
        %v2796 = vld [vmem:[#allocation2 + $0x9] sm:$0x1]
        %v2797 = vld [vmem:[#allocation2 + $0xa] sm:$0x1]
        %v2798 = vld [vmem:[#allocation2 + $0xb] sm:$0x1]
        %v2799 = vld [vmem:[#allocation2 + $0xc] sm:$0x1]
        %v2800 = vld [vmem:[#allocation2 + $0xd] sm:$0x1]
        %v2801 = vld [vmem:[#allocation2 + $0xe] sm:$0x1]
        %v2802 = vld [vmem:[#allocation2 + $0xf] sm:$0x1]
        %v2803 = vld [vmem:[#allocation8] sm:$0xff]
        %v2804 = vld [vmem:[#allocation8 + $0x8] sm:$0xff]
        %v2805 = vld [vmem:[#allocation8 + $0x10] sm:$0xff]
        %v2806 = vld [vmem:[#allocation8 + $0x18] sm:$0xff]
        %v2807 = vld [vmem:[#allocation8 + $0x20] sm:$0xff]
        %v2808 = vld [vmem:[#allocation8 + $0x28] sm:$0xff]
        %v2809 = vld [vmem:[#allocation8 + $0x30] sm:$0xff]
        %v2810 = vld [vmem:[#allocation8 + $0x38] sm:$0xff]
        %v2811 = vld [vmem:[#allocation8 + $0x40] sm:$0xff]
        %v2812 = vld [vmem:[#allocation8 + $0x48] sm:$0xff]
        %v2813 = vld [vmem:[#allocation8 + $0x50] sm:$0xff]
        %v2814 = vld [vmem:[#allocation8 + $0x58] sm:$0xff]
        %v2815 = vld [vmem:[#allocation8 + $0x60] sm:$0xff]
        %v2816 = vld [vmem:[#allocation8 + $0x68] sm:$0xff]
        %v2817 = vld [vmem:[#allocation8 + $0x70] sm:$0xff]
        %v2818 = vld [vmem:[#allocation8 + $0x78] sm:$0xff]
        %v2819 = vld [vmem:[%s3] sm:$0x1]
        %v2821 = vlaneseq
        %v2822 = vshrl.u32 %v2821, 7
        %v2823 = vsub.s32 0, %v2822
        %v2824 = vrot.slane %v2819, %v2823
        %v2842 = vcombine.low %v2787, %v2788
        %v2843 = vcombine.low %v2789, %v2790
        %v2844 = vcombine.low %v2791, %v2792
        %v2845 = vcombine.low %v2793, %v2794
        %v2847 = vunpack.c.l.s4 1966171168
        %v2848 = vunpack.c.0.s8 %v2847
        %v2849 = vlaneseq
        %v2850 = vshrl.u32 %v2849, 7
        %v2851 = vsub.s32 %v2848, %v2850
        %v2852 = vrot.slane %v2842, %v2851
        %v2854 = vunpack.c.l.s4 1966171168
        %v2855 = vunpack.c.0.s8 %v2854
        %v2856 = vlaneseq
        %v2857 = vshrl.u32 %v2856, 7
        %v2858 = vsub.s32 %v2855, %v2857
        %v2859 = vrot.slane %v2843, %v2858
        %v2861 = vunpack.c.l.s4 1966171168
        %v2862 = vunpack.c.0.s8 %v2861
        %v2863 = vlaneseq
        %v2864 = vshrl.u32 %v2863, 7
        %v2865 = vsub.s32 %v2862, %v2864
        %v2866 = vrot.slane %v2844, %v2865
        %v2868 = vunpack.c.l.s4 1966171168
        %v2869 = vunpack.c.0.s8 %v2868
        %v2870 = vlaneseq
        %v2871 = vshrl.u32 %v2870, 7
        %v2872 = vsub.s32 %v2869, %v2871
        %v2873 = vrot.slane %v2845, %v2872
        %v2874 = vcombine.low %v2852, %v2859
        %v2875 = vcombine.low %v2866, %v2873
        %v2877 = vunpack.c.l.s4 1966171168
        %v2878 = vunpack.c.0.s8 %v2877
        %v2879 = vlaneseq
        %v2880 = vshrl.u32 %v2879, 7
        %v2881 = vsub.s32 %v2878, %v2880
        %v2882 = vrot.slane %v2874, %v2881
        %v2884 = vunpack.c.l.s4 1966171168
        %v2885 = vunpack.c.0.s8 %v2884
        %v2886 = vlaneseq
        %v2887 = vshrl.u32 %v2886, 7
        %v2888 = vsub.s32 %v2885, %v2887
        %v2889 = vrot.slane %v2875, %v2888
        %v2890 = vcombine.low %v2882, %v2889
        %v2891 = vcombine.low %v2795, %v2796
        %v2892 = vcombine.low %v2797, %v2798
        %v2893 = vcombine.low %v2799, %v2800
        %v2894 = vcombine.low %v2801, %v2802
        %v2896 = vunpack.c.l.s4 1966171168
        %v2897 = vunpack.c.0.s8 %v2896
        %v2898 = vlaneseq
        %v2899 = vshrl.u32 %v2898, 7
        %v2900 = vsub.s32 %v2897, %v2899
        %v2901 = vrot.slane %v2891, %v2900
        %v2903 = vunpack.c.l.s4 1966171168
        %v2904 = vunpack.c.0.s8 %v2903
        %v2905 = vlaneseq
        %v2906 = vshrl.u32 %v2905, 7
        %v2907 = vsub.s32 %v2904, %v2906
        %v2908 = vrot.slane %v2892, %v2907
        %v2910 = vunpack.c.l.s4 1966171168
        %v2911 = vunpack.c.0.s8 %v2910
        %v2912 = vlaneseq
        %v2913 = vshrl.u32 %v2912, 7
        %v2914 = vsub.s32 %v2911, %v2913
        %v2915 = vrot.slane %v2893, %v2914
        %v2917 = vunpack.c.l.s4 1966171168
        %v2918 = vunpack.c.0.s8 %v2917
        %v2919 = vlaneseq
        %v2920 = vshrl.u32 %v2919, 7
        %v2921 = vsub.s32 %v2918, %v2920
        %v2922 = vrot.slane %v2894, %v2921
        %v2923 = vcombine.low %v2901, %v2908
        %v2924 = vcombine.low %v2915, %v2922
        %v2926 = vunpack.c.l.s4 1966171168
        %v2927 = vunpack.c.0.s8 %v2926
        %v2928 = vlaneseq
        %v2929 = vshrl.u32 %v2928, 7
        %v2930 = vsub.s32 %v2927, %v2929
        %v2931 = vrot.slane %v2923, %v2930
        %v2933 = vunpack.c.l.s4 1966171168
        %v2934 = vunpack.c.0.s8 %v2933
        %v2935 = vlaneseq
        %v2936 = vshrl.u32 %v2935, 7
        %v2937 = vsub.s32 %v2934, %v2936
        %v2938 = vrot.slane %v2924, %v2937
        %v2939 = vcombine.low %v2931, %v2938
        %2942 = vmatprep.subr.mxu0 0.0
        %2943 = vmatpush1.msra.mxu0 %v2803
        %2944 = vmatprep.subr.mxu0 0.0
        %2945 = vmatpush1.msra.mxu0 %v2804
        %2946 = vmatprep.subr.mxu0 0.0
        %2947 = vmatpush1.msra.mxu0 %v2805
        %2948 = vmatprep.subr.mxu0 0.0
        %2949 = vmatpush1.msra.mxu0 %v2806
        %2950 = vmatprep.subr.mxu0 0.0
        %2951 = vmatpush1.msra.mxu0 %v2807
        %2952 = vmatprep.subr.mxu0 0.0
        %2953 = vmatpush1.msra.mxu0 %v2808
        %2954 = vmatprep.subr.mxu0 0.0
        %2955 = vmatpush1.msra.mxu0 %v2809
        %2956 = vmatprep.subr.mxu0 0.0
        %2957 = vmatpush1.msra.mxu0 %v2810
        %2958 = vmatprep.subr.mxu0 0.0
        %2959 = vmatpush1.msra.mxu0 %v2811
        %2960 = vmatprep.subr.mxu0 0.0
        %2961 = vmatpush1.msra.mxu0 %v2812
        %2962 = vmatprep.subr.mxu0 0.0
        %2963 = vmatpush1.msra.mxu0 %v2813
        %2964 = vmatprep.subr.mxu0 0.0
        %2965 = vmatpush1.msra.mxu0 %v2814
        %2966 = vmatprep.subr.mxu0 0.0
        %2967 = vmatpush1.msra.mxu0 %v2815
        %2968 = vmatprep.subr.mxu0 0.0
        %2969 = vmatpush1.msra.mxu0 %v2816
        %2970 = vmatprep.subr.mxu0 0.0
        %2971 = vmatpush1.msra.mxu0 %v2817
        %2972 = vmatprep.subr.mxu0 0.0
        %2973 = vmatpush1.msra.mxu0 %v2818
        %2974 = vmatprep.subr.mxu0 0.0
        %2975 = vmatpush1.msra.mxu0 0.0
        %2976 = vmatprep.subr.mxu0 0.0
        %2977 = vmatpush1.msra.mxu0 0.0
        %2978 = vmatprep.subr.mxu0 0.0
        %2979 = vmatpush1.msra.mxu0 0.0
        %2980 = vmatprep.subr.mxu0 0.0
        %2981 = vmatpush1.msra.mxu0 0.0
        %2982 = vmatprep.subr.mxu0 0.0
        %2983 = vmatpush1.msra.mxu0 0.0
        %2984 = vmatprep.subr.mxu0 0.0
        %2985 = vmatpush1.msra.mxu0 0.0
        %2986 = vmatprep.subr.mxu0 0.0
        %2987 = vmatpush1.msra.mxu0 0.0
        %2988 = vmatprep.subr.mxu0 0.0
        %2989 = vmatpush1.msra.mxu0 0.0
        %2990 = vmatprep.subr.mxu0 0.0
        %2991 = vmatpush1.msra.mxu0 0.0
        %2992 = vmatprep.subr.mxu0 0.0
        %2993 = vmatpush1.msra.mxu0 0.0
        %2994 = vmatprep.subr.mxu0 0.0
        %2995 = vmatpush1.msra.mxu0 0.0
        %2996 = vmatprep.subr.mxu0 0.0
        %2997 = vmatpush1.msra.mxu0 0.0
        %2998 = vmatprep.subr.mxu0 0.0
        %2999 = vmatpush1.msra.mxu0 0.0
        %3000 = vmatprep.subr.mxu0 0.0
        %3001 = vmatpush1.msra.mxu0 0.0
        %3002 = vmatprep.subr.mxu0 0.0
        %3003 = vmatpush1.msra.mxu0 0.0
        %3004 = vmatprep.subr.mxu0 0.0
        %3005 = vmatpush1.msra.mxu0 0.0
        %3006 = vmatprep.mubr.f32.mxu0 0.0
        %3007 = vmatmul.mubr.f32.gmra.mrb[0].mxu0 %v2890
        %v3008 = vpop.f32.mrb[0].mxu0
        %v3009 = vadd.f32 %v2824, %v3008
        %v3010 = vpop.f32.mrb[0].mxu0
        %3011 = vmatprep.mubr.f32.mxu0 0.0
        %3012 = vmatmul.mubr.f32.gmra.mrb[0].mxu0 %v2939
        %v3013 = vpop.f32.mrb[0].mxu0
        %v3014 = vadd.f32 %v2824, %v3013
        %v3015 = vpop.f32.mrb[0].mxu0
        %3016 = vdwg.mxu0
        %v3017 = vmax.f32 %v3009, 0.0
        %v3018 = vmax.f32 %v3014, 0.0
        %3019 = vst [vmem:[%s269] sm:$0xff] %v3017
        %3020 = vst [vmem:[%s269 + $0x8] sm:$0xff] %v3018
        %s3021 = sand.u32 %s126, 1
        %s3022 = scalar_lea.sflag [#allocation5], %s3021
        %s3023 = sand.u32 %s126, 1
        %s3024 = smul.addr %s3023, 16
        %s3025 = scalar_lea.vmem [#allocation9], %s3024
        // Predicated region
        $region49: #{tpu_custom_call.1} parent=35 // pred_check
          %p3026 = pneg %p136
        $region50: #{tpu_custom_call.1} parent=35 // pred_check_branch
          %3028 = sbr.rel (%p3026) target = $region52
        $region51: #{tpu_custom_call.1} parent=35 // pred_region
          %s3029 = smul.u32 2, %s24
          %s3031 = ssub.s32 256, 256
          %3032 = vsyncadd %s3022, %s3031
          %s3033 = smul.addr %s3029, 128
          %s3034 = scalar_lea.hbm %s4, %s3033
          %s3035 = sshll.u32 %s3025, 4
          %s3036 = int_to_ptr.vmem [resolvable:$true] %s3035
          %3041 = dma.vmem_to_hbm [thread:$0]  %s3036, 256, %s3034, %s3022, 128, 128, 8
        $region52: #{tpu_custom_call.1} parent=35 // pred_fallthru
          _
      $region36: #{tpu_custom_call.1} parent=5 // pred_fallthru
        _
      %p3042 = scmp.le.s32.totalorder 2, %s19
      // Predicated region
      $region53: #{tpu_custom_call.1} parent=5 // pred_check
        %p3043 = pneg %p3042
      $region54: #{tpu_custom_call.1} parent=5 // pred_check_branch
        %3045 = sbr.rel (%p3043) target = $region56
      $region55: #{tpu_custom_call.1} parent=5 // pred_region
        %s3046 = ssub.s32 %s19, 2
        // Predicated region
        $region57: #{tpu_custom_call.1} parent=55 // pred_check
          %p3047 = pneg %p142
        $region58: #{tpu_custom_call.1} parent=55 // pred_check_branch
          %3049 = sbr.rel (%p3047) target = $region60
        $region59: #{tpu_custom_call.1} parent=55 // pred_region
          %s3050 = sand.u32 %s127, 1
          %s3051 = scalar_lea.sflag [#allocation5], %s3050
          %s3052 = sand.u32 %s127, 1
          %s3053 = smul.addr %s3052, 16
          %s3054 = scalar_lea.vmem [#allocation9], %s3053
          %3055 = dma.done %s3051, 256
        $region60: #{tpu_custom_call.1} parent=55 // pred_fallthru
          _
      $region56: #{tpu_custom_call.1} parent=5 // pred_fallthru
        _
    $region6: #{tpu_custom_call.1} parent=1 // loop_footer
      %s23 = sadd.s32 1, %s19
    $region7: #{tpu_custom_call.1} parent=1 // loop_footer_branch
      %18 = sbr.rel target = $region3
    $region8: #{tpu_custom_call.1} parent=1 // loop_exit
      _
    %3056 = vsyncpa [#allocation4], 1
    %s3057 = scalar_lea.sflag [#allocation4], 1
    %3058 = vsyncpa %s3057, 1
    %3059 = vsyncpa [#allocation7], 1
    %s3060 = scalar_lea.sflag [#allocation7], 1
    %3061 = vsyncpa %s3060, 1
    %3062 = vsyncpa [#allocation5], 1
    %s3063 = scalar_lea.sflag [#allocation5], 1
    %3064 = vsyncpa %s3063, 1

</llo_original>
